<compile_context>
chip_gen: v7x
topology: tpu7x:2x2x1
jax: 0.10.0
libtpu: 0.0.40
codegen_flags: <defaults>
</compile_context>

<pallas_src>
import functools

import numpy as np
import jax
import jax.numpy as jnp
from jax import lax
from jax.experimental import pallas as pl
from jax.experimental.pallas import tpu as pltpu

QDIM = 4                        # number of generalized coordinates
HIDDEN = 32                     # shared embedding width (SharedMMVEmbed hidden_sizes=[32, 32])
MPAR = QDIM * (QDIM + 1) // 2   # number of Cholesky parameters (10)
DIAG_BIAS = 1.0                 # CholeskyMMNet diagonal bias
BATCH = 16
BLOCK_B = 8                     # batch rows per grid step (multiple of 8)


def delan_kernel(x_ref, w_ref, out_ref, *, n, H):
    f32 = jnp.float32
    bf16 = jnp.bfloat16
    TB = x_ref.shape[1]          # batch rows handled by this grid step
    nsq = n * n
    hw = 2 * n + 2 * nsq         # head width: [G | raw diag | Loff flat | Loff flat^T]

    q = x_ref[0]                 # (TB, n)
    v = x_ref[1]
    qdd = x_ref[2]

    # packed parameter slab (single input)
    w2t = w_ref[0:H, 0:H]                              # (H, H)  = W2^T
    wht = w_ref[H:2 * H, 0:hw]                         # (H, hw) fused heads + folded scatter
    w1t = w_ref[2 * H:2 * H + n, 0:H]                  # (n, H)  = W1^T
    b1 = w_ref[2 * H + n:2 * H + n + 1, 0:H]           # (1, H)
    b2 = w_ref[2 * H + n + 1:2 * H + n + 2, 0:H]       # (1, H)
    bh = w_ref[2 * H + n + 2:2 * H + n + 3, 0:hw]      # (1, hw)

    # ---- shared embedding, layer 1 (K = n = 4): VPU broadcast-FMAs, exact f32 ----
    # TODO(synk): mechamodlearn's LNMLP internals (LayerNorm / activation) are not given;
    # approximated with a plain tanh MLP of the same layer shapes (Jacobian matches it).
    a1 = q[:, 0:1] * w1t[0:1, :]
    for k in range(1, n):
        a1 = a1 + q[:, k:k + 1] * w1t[k:k + 1, :]
    h1 = jnp.tanh(a1 + b1)                              # (TB, H)
    d1 = 1.0 - h1 * h1

    # ---- layer 2: value pass + all n Jacobian directions in ONE MXU dot ----
    # sublane-stacked rows: [h1 | d1*W1[:,0] | ... | d1*W1[:,n-1]]
    z1 = jnp.concatenate([h1] + [d1 * w1t[k:k + 1, :] for k in range(n)], axis=0)
    pre2 = jnp.dot(z1.astype(bf16), w2t.astype(bf16),
                   preferred_element_type=f32)          # ((n+1)TB, H)
    h2 = jnp.tanh(pre2[0:TB] + b2)
    d2 = 1.0 - h2 * h2

    # ---- fused heads (value + Jacobian) in ONE MXU dot ----
    z2 = jnp.concatenate(
        [h2] + [d2 * pre2[(k + 1) * TB:(k + 2) * TB] for k in range(n)], axis=0)
    heads = jnp.dot(z2.astype(bf16), wht.astype(bf16),
                    preferred_element_type=f32)         # ((n+1)TB, hw)
    head = heads[0:TB] + bh                             # value pass
    thead = heads[TB:]                                  # Jacobian pass (bias drops)

    G = head[:, 0:n]                                    # grad-potential net
    ld = head[:, n:2 * n]                               # raw diagonal (+ DIAG_BIAS)
    lf = head[:, 2 * n:2 * n + nsq]                     # off-diag L, flat row-major
    lfT = head[:, 2 * n + nsq:hw]                       # off-diag L, flat transposed
    tld = thead[:, n:2 * n]                             # d(raw diag)/dq_k (k-stacked)
    tlf = thead[:, 2 * n:2 * n + nsq]                   # d(off-diag L)/dq_k, flat
    tlfT = thead[:, 2 * n + nsq:hw]                     # d(off-diag L)/dq_k, flat^T

    # overflow-safe softplus / sigmoid, sharing one exp
    e = jnp.exp(-jnp.abs(ld))
    inv = 1.0 / (1.0 + e)
    sp = jnp.maximum(ld, 0.0) + jnp.log(1.0 + e)        # softplus -> positive diag of L
    sig = jnp.where(ld >= 0.0, inv, e * inv)            # d softplus / d raw

    # u = L^T v, uq = L^T qddotd  (diagonal applied elementwise, never scattered)
    u = sp * v
    uq = sp * qdd
    for i in range(n):
        u = u + lf[:, i * n:(i + 1) * n] * v[:, i:i + 1]
        uq = uq + lf[:, i * n:(i + 1) * n] * qdd[:, i:i + 1]

    eye = (lax.broadcasted_iota(jnp.int32, (n, n), 0)
           == lax.broadcasted_iota(jnp.int32, (n, n), 1)).astype(f32)

    # Coriolis pieces, one direction k at a time (no n*TB-row tiles of v / u / sig)
    wv = jnp.zeros((TB, n), f32)        # sum_k v_k (dL_k)^T v
    tdv = jnp.zeros((TB, n), f32)       # sum_k v_k diag(dL_k)
    tLvT = jnp.zeros((TB, nsq), f32)    # sum_k v_k dLoff_k (transposed flat)
    term2 = jnp.zeros((TB, n), f32)     # 0.5 d(v^T M v)/dq
    for k in range(n):
        blk = tlf[k * TB:(k + 1) * TB, :]
        blkT = tlfT[k * TB:(k + 1) * TB, :]
        tdk = sig * tld[k * TB:(k + 1) * TB, :]          # diag of dL_k
        wk = tdk * v                                     # wk = (dL_k)^T v
        for i in range(n):
            wk = wk + blk[:, i * n:(i + 1) * n] * v[:, i:i + 1]
        vk = v[:, k:k + 1]
        wv = wv + vk * wk
        tdv = tdv + vk * tdk
        tLvT = tLvT + vk * blkT
        term2 = term2 + jnp.sum(u * wk, axis=1, keepdims=True) * eye[k:k + 1, :]

    # term1 = (sum_k v_k dL_k) u + L wv ;   M qddotd = L (L^T qddotd)
    term1 = tdv * u + sp * wv
    mqdd = sp * uq
    for j in range(n):
        term1 = (term1
                 + tLvT[:, j * n:(j + 1) * n] * u[:, j:j + 1]
                 + lfT[:, j * n:(j + 1) * n] * wv[:, j:j + 1])
        mqdd = mqdd + lfT[:, j * n:(j + 1) * n] * uq[:, j:j + 1]

    # TODO(synk): lane-dense output (batch on lanes) for production throughput.
    out_ref[...] = (mqdd + term1 - term2 + G).astype(out_ref.dtype)


def make_constants(n):
    """Strictly-lower scatter (flat row-major | flat transposed) and diag selector."""
    m = n * (n + 1) // 2
    nsq = n * n
    tri_i, tri_j = np.tril_indices(n)
    soff = np.zeros((m, 2 * nsq), np.float32)
    dsel = np.zeros((n, m), np.float32)
    for p in range(m):
        i, j = int(tri_i[p]), int(tri_j[p])
        if i == j:
            dsel[i, p] = 1.0
        else:
            soff[p, i * n + j] = 1.0          # row-major flat
            soff[p, nsq + j * n + i] = 1.0    # transposed flat
    return soff, dsel


def pack_params(params, consts, n):
    """Host-side (once per set of weights): fold the linear scatter into the head
    weights and pack everything into a single f32 slab -> one DMA descriptor."""
    soff, dsel = consts
    H = params["W1"].shape[0]
    nsq = n * n
    hw = 2 * n + 2 * nsq
    width = max(H, hw)

    WL, bL = params["WL"], params["bL"]
    wht = jnp.concatenate([params["WG"].T,            # grad-potential head
                           (dsel @ WL).T,             # raw-diagonal head
                           WL.T @ soff], axis=1)      # folded off-diag scatter (both layouts)
    bh = jnp.concatenate([params["bG"],
                          dsel @ bL + DIAG_BIAS,
                          bL @ soff], axis=0)

    rows = 2 * H + ((n + 3 + 7) // 8) * 8
    w = jnp.zeros((rows, width), jnp.float32)
    w = w.at[0:H, 0:H].set(params["W2"].T)
    w = w.at[H:2 * H, 0:hw].set(wht)
    w = w.at[2 * H:2 * H + n, 0:H].set(params["W1"].T)
    w = w.at[2 * H + n, 0:H].set(params["b1"])
    w = w.at[2 * H + n + 1, 0:H].set(params["b2"])
    w = w.at[2 * H + n + 2, 0:hw].set(bh)
    return w


def delan_forward(q, v, qddotd, params, consts, *, block_b=None):
    B, n = q.shape
    H = params["W1"].shape[0]
    if block_b is None:
        block_b = B
    assert B % block_b == 0 and (block_b % 8 == 0 or block_b == B)

    x = jnp.stack([q, v, qddotd], axis=0).astype(jnp.float32)    # (3, B, n)
    w = pack_params(params, consts, n)

    kernel = functools.partial(delan_kernel, n=n, H=H)
    return pl.pallas_call(
        kernel,
        out_shape=jax.ShapeDtypeStruct((B, n), jnp.float32),
        grid=(B // block_b,),
        in_specs=[
            pl.BlockSpec((3, block_b, n), lambda b: (0, b, 0)),
            pl.BlockSpec(w.shape, lambda b: (0, 0)),
        ],
        out_specs=pl.BlockSpec((block_b, n), lambda b: (b, 0)),
        compiler_params=pltpu.CompilerParams(dimension_semantics=("parallel",)),
    )(x, w)


# ----------------- pure-JAX reference (semantics check, uses jacfwd) -----------------
def ref_forward(params, q, v, qdd):
    n = QDIM
    tri_i, tri_j = np.tril_indices(n)

    def embed(q1):
        h1 = jnp.tanh(params["W1"] @ q1 + params["b1"])
        h2 = jnp.tanh(params["W2"] @ h1 + params["b2"])
        return h2

    def build_L(q1):
        l = params["WL"] @ embed(q1) + params["bL"]
        L0 = jnp.zeros((n, n)).at[tri_i, tri_j].set(l)
        off = L0 - jnp.diag(jnp.diag(L0))
        diag = jnp.log(1.0 + jnp.exp(jnp.diag(L0) + DIAG_BIAS))
        return off + jnp.diag(diag)

    def mass(q1):
        L = build_L(q1)
        return L @ L.T

    def single(q1, v1, a1):
        M = mass(q1)
        dM = jax.jacfwd(mass)(q1)                        # (n, n, dq)
        t1 = jnp.einsum("ijk,j,k->i", dM, v1, v1)        # gMv @ v
        t2 = 0.5 * jnp.einsum("jki,j,k->i", dM, v1, v1)  # d(0.5 v^T M v)/dq
        Cv = t1 - t2
        G = params["WG"] @ embed(q1) + params["bG"]
        return M @ a1 + Cv + G

    return jax.vmap(single)(q, v, qdd)


if __name__ == "__main__":
    key = jax.random.PRNGKey(0)
    keys = jax.random.split(key, 12)

    def linear_init(kw, kb, fan_in, fan_out):
        bound = 1.0 / np.sqrt(fan_in)          # torch.nn.Linear default init
        W = jax.random.uniform(kw, (fan_out, fan_in), jnp.float32, -bound, bound)
        b = jax.random.uniform(kb, (fan_out,), jnp.float32, -bound, bound)
        return W, b

    W1, b1 = linear_init(keys[0], keys[1], QDIM, HIDDEN)
    W2, b2 = linear_init(keys[2], keys[3], HIDDEN, HIDDEN)
    WL, bL = linear_init(keys[4], keys[5], HIDDEN, MPAR)
    WG, bG = linear_init(keys[6], keys[7], HIDDEN, QDIM)
    params = dict(W1=W1, b1=b1, W2=W2, b2=b2, WL=WL, bL=bL, WG=WG, bG=bG)

    q = jax.random.normal(keys[8], (BATCH, QDIM), jnp.float32)
    v = jax.random.normal(keys[9], (BATCH, QDIM), jnp.float32)
    qddotd = jax.random.normal(keys[10], (BATCH, QDIM), jnp.float32)

    consts = make_constants(QDIM)

    out = jax.block_until_ready(
        delan_forward(q, v, qddotd, params, consts, block_b=BLOCK_B))

    # Reference at full f32 precision; the kernel's MXU dots run single-pass bf16 with
    # f32 accumulation (per perf review), so compare with a bf16-appropriate tolerance.
    with jax.default_matmul_precision("highest"):
        ref = jax.block_until_ready(ref_forward(params, q, v, qddotd))

    out_np, ref_np = np.asarray(out), np.asarray(ref)
    err = float(np.max(np.abs(out_np - ref_np)))
    if not np.allclose(out_np, ref_np, atol=5e-2, rtol=1e-2):
        raise AssertionError(f"kernel/reference mismatch, max abs err = {err}")
    print("KERNEL_OK")
</pallas_src>

<mosaic_0001>
module attributes {stable_mosaic.version = 11 : i64} {
  func.func @delan_kernel(%arg0: i32, %arg1: memref<3x8x4xf32, #tpu.memory_space<vmem>>, %arg2: memref<72x40xf32, #tpu.memory_space<vmem>>, %arg3: memref<8x4xf32, #tpu.memory_space<vmem>>) attributes {dimension_semantics = [#tpu.dimension_semantics<parallel>], iteration_bounds = array<i64: 2>, scalar_prefetch = 0 : i64, scratch_operands = 0 : i64, tpu.core_type = #tpu.core_type<tc>, window_params = [{transform_indices = @transform_0, window_bounds = array<i64: 3, 8, 4>}, {pipeline_mode = #tpu.pipeline_mode<synchronous>, transform_indices = @transform_1, window_bounds = array<i64: 72, 40>}, {transform_indices = @transform_2, window_bounds = array<i64: 8, 4>}]} {
    %c0 = arith.constant 0 : index
    %c0_0 = arith.constant 0 : index
    %c0_1 = arith.constant 0 : index
    %0 = vector.load %arg1[%c0, %c0_0, %c0_1] : memref<3x8x4xf32, #tpu.memory_space<vmem>>, vector<1x8x4xf32>
    %1 = vector.shape_cast %0 : vector<1x8x4xf32> to vector<8x4xf32>
    %c1 = arith.constant 1 : index
    %c0_2 = arith.constant 0 : index
    %c0_3 = arith.constant 0 : index
    %2 = vector.load %arg1[%c1, %c0_2, %c0_3] : memref<3x8x4xf32, #tpu.memory_space<vmem>>, vector<1x8x4xf32>
    %3 = vector.shape_cast %2 : vector<1x8x4xf32> to vector<8x4xf32>
    %c2 = arith.constant 2 : index
    %c0_4 = arith.constant 0 : index
    %c0_5 = arith.constant 0 : index
    %4 = vector.load %arg1[%c2, %c0_4, %c0_5] : memref<3x8x4xf32, #tpu.memory_space<vmem>>, vector<1x8x4xf32>
    %5 = vector.shape_cast %4 : vector<1x8x4xf32> to vector<8x4xf32>
    %c0_6 = arith.constant 0 : index
    %c0_7 = arith.constant 0 : index
    %6 = vector.load %arg2[%c0_6, %c0_7] : memref<72x40xf32, #tpu.memory_space<vmem>>, vector<32x32xf32>
    %c32 = arith.constant 32 : index
    %c0_8 = arith.constant 0 : index
    %7 = vector.load %arg2[%c32, %c0_8] : memref<72x40xf32, #tpu.memory_space<vmem>>, vector<32x40xf32>
    %c64 = arith.constant 64 : index
    %c0_9 = arith.constant 0 : index
    %8 = vector.load %arg2[%c64, %c0_9] : memref<72x40xf32, #tpu.memory_space<vmem>>, vector<4x32xf32>
    %c68 = arith.constant 68 : index
    %c0_10 = arith.constant 0 : index
    %9 = vector.load %arg2[%c68, %c0_10] : memref<72x40xf32, #tpu.memory_space<vmem>>, vector<1x32xf32>
    %c69 = arith.constant 69 : index
    %c0_11 = arith.constant 0 : index
    %10 = vector.load %arg2[%c69, %c0_11] : memref<72x40xf32, #tpu.memory_space<vmem>>, vector<1x32xf32>
    %c70 = arith.constant 70 : index
    %c0_12 = arith.constant 0 : index
    %11 = vector.load %arg2[%c70, %c0_12] : memref<72x40xf32, #tpu.memory_space<vmem>>, vector<1x40xf32>
    %12 = vector.extract_strided_slice %1 {offsets = [0, 0], sizes = [8, 1], strides = [1, 1]} : vector<8x4xf32> to vector<8x1xf32>
    %13 = vector.extract_strided_slice %8 {offsets = [0, 0], sizes = [1, 32], strides = [1, 1]} : vector<4x32xf32> to vector<1x32xf32>
    %14 = vector.broadcast %12 : vector<8x1xf32> to vector<8x32xf32>
    %15 = vector.broadcast %13 : vector<1x32xf32> to vector<8x32xf32>
    %16 = arith.mulf %14, %15 : vector<8x32xf32>
    %17 = vector.extract_strided_slice %1 {offsets = [0, 1], sizes = [8, 1], strides = [1, 1]} : vector<8x4xf32> to vector<8x1xf32>
    %18 = vector.extract_strided_slice %8 {offsets = [1, 0], sizes = [1, 32], strides = [1, 1]} : vector<4x32xf32> to vector<1x32xf32>
    %19 = vector.broadcast %17 : vector<8x1xf32> to vector<8x32xf32>
    %20 = vector.broadcast %18 : vector<1x32xf32> to vector<8x32xf32>
    %21 = arith.mulf %19, %20 : vector<8x32xf32>
    %22 = arith.addf %16, %21 : vector<8x32xf32>
    %23 = vector.extract_strided_slice %1 {offsets = [0, 2], sizes = [8, 1], strides = [1, 1]} : vector<8x4xf32> to vector<8x1xf32>
    %24 = vector.extract_strided_slice %8 {offsets = [2, 0], sizes = [1, 32], strides = [1, 1]} : vector<4x32xf32> to vector<1x32xf32>
    %25 = vector.broadcast %23 : vector<8x1xf32> to vector<8x32xf32>
    %26 = vector.broadcast %24 : vector<1x32xf32> to vector<8x32xf32>
    %27 = arith.mulf %25, %26 : vector<8x32xf32>
    %28 = arith.addf %22, %27 : vector<8x32xf32>
    %29 = vector.extract_strided_slice %1 {offsets = [0, 3], sizes = [8, 1], strides = [1, 1]} : vector<8x4xf32> to vector<8x1xf32>
    %30 = vector.extract_strided_slice %8 {offsets = [3, 0], sizes = [1, 32], strides = [1, 1]} : vector<4x32xf32> to vector<1x32xf32>
    %31 = vector.broadcast %29 : vector<8x1xf32> to vector<8x32xf32>
    %32 = vector.broadcast %30 : vector<1x32xf32> to vector<8x32xf32>
    %33 = arith.mulf %31, %32 : vector<8x32xf32>
    %34 = arith.addf %28, %33 : vector<8x32xf32>
    %35 = vector.broadcast %9 : vector<1x32xf32> to vector<8x32xf32>
    %36 = arith.addf %34, %35 : vector<8x32xf32>
    %37 = math.tanh %36 : vector<8x32xf32>
    %38 = arith.mulf %37, %37 : vector<8x32xf32>
    %cst = arith.constant 1.000000e+00 : f32
    %39 = vector.broadcast %cst : f32 to vector<8x32xf32>
    %40 = arith.subf %39, %38 : vector<8x32xf32>
    %41 = vector.extract_strided_slice %8 {offsets = [0, 0], sizes = [1, 32], strides = [1, 1]} : vector<4x32xf32> to vector<1x32xf32>
    %42 = vector.broadcast %41 : vector<1x32xf32> to vector<8x32xf32>
    %43 = arith.mulf %40, %42 : vector<8x32xf32>
    %44 = vector.extract_strided_slice %8 {offsets = [1, 0], sizes = [1, 32], strides = [1, 1]} : vector<4x32xf32> to vector<1x32xf32>
    %45 = vector.broadcast %44 : vector<1x32xf32> to vector<8x32xf32>
    %46 = arith.mulf %40, %45 : vector<8x32xf32>
    %47 = vector.extract_strided_slice %8 {offsets = [2, 0], sizes = [1, 32], strides = [1, 1]} : vector<4x32xf32> to vector<1x32xf32>
    %48 = vector.broadcast %47 : vector<1x32xf32> to vector<8x32xf32>
    %49 = arith.mulf %40, %48 : vector<8x32xf32>
    %50 = vector.extract_strided_slice %8 {offsets = [3, 0], sizes = [1, 32], strides = [1, 1]} : vector<4x32xf32> to vector<1x32xf32>
    %51 = vector.broadcast %50 : vector<1x32xf32> to vector<8x32xf32>
    %52 = arith.mulf %40, %51 : vector<8x32xf32>
    %53 = tpu.concatenate %37, %43, %46, %49, %52 in 0 : vector<8x32xf32>, vector<8x32xf32>, vector<8x32xf32>, vector<8x32xf32>, vector<8x32xf32> -> vector<40x32xf32>
    %54 = arith.truncf %53 : vector<40x32xf32> to vector<40x32xbf16>
    %55 = arith.truncf %6 : vector<32x32xf32> to vector<32x32xbf16>
    %cst_13 = arith.constant dense<0.000000e+00> : vector<40x32xf32>
    %56 = tpu.matmul %54, %55, %cst_13 {dimension_numbers = #tpu.dot_dimension_numbers<[1], [0], [0], [1], [0, 0, 1, 1], [], []>} : vector<40x32xbf16>, vector<32x32xbf16>, vector<40x32xf32> -> vector<40x32xf32>
    %57 = vector.extract_strided_slice %56 {offsets = [0, 0], sizes = [8, 32], strides = [1, 1]} : vector<40x32xf32> to vector<8x32xf32>
    %58 = vector.broadcast %10 : vector<1x32xf32> to vector<8x32xf32>
    %59 = arith.addf %57, %58 : vector<8x32xf32>
    %60 = math.tanh %59 : vector<8x32xf32>
    %61 = arith.mulf %60, %60 : vector<8x32xf32>
    %cst_14 = arith.constant 1.000000e+00 : f32
    %62 = vector.broadcast %cst_14 : f32 to vector<8x32xf32>
    %63 = arith.subf %62, %61 : vector<8x32xf32>
    %64 = vector.extract_strided_slice %56 {offsets = [8, 0], sizes = [8, 32], strides = [1, 1]} : vector<40x32xf32> to vector<8x32xf32>
    %65 = arith.mulf %63, %64 : vector<8x32xf32>
    %66 = vector.extract_strided_slice %56 {offsets = [16, 0], sizes = [8, 32], strides = [1, 1]} : vector<40x32xf32> to vector<8x32xf32>
    %67 = arith.mulf %63, %66 : vector<8x32xf32>
    %68 = vector.extract_strided_slice %56 {offsets = [24, 0], sizes = [8, 32], strides = [1, 1]} : vector<40x32xf32> to vector<8x32xf32>
    %69 = arith.mulf %63, %68 : vector<8x32xf32>
    %70 = vector.extract_strided_slice %56 {offsets = [32, 0], sizes = [8, 32], strides = [1, 1]} : vector<40x32xf32> to vector<8x32xf32>
    %71 = arith.mulf %63, %70 : vector<8x32xf32>
    %72 = tpu.concatenate %60, %65, %67, %69, %71 in 0 : vector<8x32xf32>, vector<8x32xf32>, vector<8x32xf32>, vector<8x32xf32>, vector<8x32xf32> -> vector<40x32xf32>
    %73 = arith.truncf %72 : vector<40x32xf32> to vector<40x32xbf16>
    %74 = arith.truncf %7 : vector<32x40xf32> to vector<32x40xbf16>
    %cst_15 = arith.constant dense<0.000000e+00> : vector<40x40xf32>
    %75 = tpu.matmul %73, %74, %cst_15 {dimension_numbers = #tpu.dot_dimension_numbers<[1], [0], [0], [1], [0, 0, 1, 1], [], []>} : vector<40x32xbf16>, vector<32x40xbf16>, vector<40x40xf32> -> vector<40x40xf32>
    %76 = vector.extract_strided_slice %75 {offsets = [0, 0], sizes = [8, 40], strides = [1, 1]} : vector<40x40xf32> to vector<8x40xf32>
    %77 = vector.broadcast %11 : vector<1x40xf32> to vector<8x40xf32>
    %78 = arith.addf %76, %77 : vector<8x40xf32>
    %79 = vector.extract_strided_slice %75 {offsets = [8, 0], sizes = [32, 40], strides = [1, 1]} : vector<40x40xf32> to vector<32x40xf32>
    %80 = vector.extract_strided_slice %78 {offsets = [0, 0], sizes = [8, 4], strides = [1, 1]} : vector<8x40xf32> to vector<8x4xf32>
    %81 = vector.extract_strided_slice %78 {offsets = [0, 4], sizes = [8, 4], strides = [1, 1]} : vector<8x40xf32> to vector<8x4xf32>
    %82 = vector.extract_strided_slice %78 {offsets = [0, 8], sizes = [8, 16], strides = [1, 1]} : vector<8x40xf32> to vector<8x16xf32>
    %83 = vector.extract_strided_slice %78 {offsets = [0, 24], sizes = [8, 16], strides = [1, 1]} : vector<8x40xf32> to vector<8x16xf32>
    %84 = vector.extract_strided_slice %79 {offsets = [0, 4], sizes = [32, 4], strides = [1, 1]} : vector<32x40xf32> to vector<32x4xf32>
    %85 = vector.extract_strided_slice %79 {offsets = [0, 8], sizes = [32, 16], strides = [1, 1]} : vector<32x40xf32> to vector<32x16xf32>
    %86 = vector.extract_strided_slice %79 {offsets = [0, 24], sizes = [32, 16], strides = [1, 1]} : vector<32x40xf32> to vector<32x16xf32>
    %87 = math.absf %81 : vector<8x4xf32>
    %cst_16 = arith.constant 0.000000e+00 : f32
    %88 = vector.broadcast %cst_16 : f32 to vector<8x4xf32>
    %89 = arith.subf %88, %87 : vector<8x4xf32>
    %90 = math.exp %89 : vector<8x4xf32>
    %cst_17 = arith.constant 1.000000e+00 : f32
    %91 = vector.broadcast %cst_17 : f32 to vector<8x4xf32>
    %92 = arith.addf %91, %90 : vector<8x4xf32>
    %cst_18 = arith.constant 1.000000e+00 : f32
    %93 = vector.broadcast %cst_18 : f32 to vector<8x4xf32>
    %94 = arith.divf %93, %92 : vector<8x4xf32>
    %cst_19 = arith.constant 0.000000e+00 : f32
    %95 = vector.broadcast %cst_19 : f32 to vector<8x4xf32>
    %96 = arith.maximumf %81, %95 : vector<8x4xf32>
    %cst_20 = arith.constant 1.000000e+00 : f32
    %97 = vector.broadcast %cst_20 : f32 to vector<8x4xf32>
    %98 = arith.addf %97, %90 : vector<8x4xf32>
    %99 = math.log %98 : vector<8x4xf32>
    %100 = arith.addf %96, %99 : vector<8x4xf32>
    %cst_21 = arith.constant 0.000000e+00 : f32
    %101 = vector.broadcast %cst_21 : f32 to vector<8x4xf32>
    %102 = arith.cmpf oge, %81, %101 : vector<8x4xf32>
    %103 = arith.mulf %90, %94 : vector<8x4xf32>
    %104 = arith.select %102, %94, %103 : vector<8x4xi1>, vector<8x4xf32>
    %105 = arith.mulf %100, %3 : vector<8x4xf32>
    %106 = arith.mulf %100, %5 : vector<8x4xf32>
    %107 = vector.extract_strided_slice %82 {offsets = [0, 0], sizes = [8, 4], strides = [1, 1]} : vector<8x16xf32> to vector<8x4xf32>
    %108 = vector.extract_strided_slice %3 {offsets = [0, 0], sizes = [8, 1], strides = [1, 1]} : vector<8x4xf32> to vector<8x1xf32>
    %109 = vector.broadcast %108 : vector<8x1xf32> to vector<8x4xf32>
    %110 = arith.mulf %107, %109 : vector<8x4xf32>
    %111 = arith.addf %105, %110 : vector<8x4xf32>
    %112 = vector.extract_strided_slice %82 {offsets = [0, 0], sizes = [8, 4], strides = [1, 1]} : vector<8x16xf32> to vector<8x4xf32>
    %113 = vector.extract_strided_slice %5 {offsets = [0, 0], sizes = [8, 1], strides = [1, 1]} : vector<8x4xf32> to vector<8x1xf32>
    %114 = vector.broadcast %113 : vector<8x1xf32> to vector<8x4xf32>
    %115 = arith.mulf %112, %114 : vector<8x4xf32>
    %116 = arith.addf %106, %115 : vector<8x4xf32>
    %117 = vector.extract_strided_slice %82 {offsets = [0, 4], sizes = [8, 4], strides = [1, 1]} : vector<8x16xf32> to vector<8x4xf32>
    %118 = vector.extract_strided_slice %3 {offsets = [0, 1], sizes = [8, 1], strides = [1, 1]} : vector<8x4xf32> to vector<8x1xf32>
    %119 = vector.broadcast %118 : vector<8x1xf32> to vector<8x4xf32>
    %120 = arith.mulf %117, %119 : vector<8x4xf32>
    %121 = arith.addf %111, %120 : vector<8x4xf32>
    %122 = vector.extract_strided_slice %82 {offsets = [0, 4], sizes = [8, 4], strides = [1, 1]} : vector<8x16xf32> to vector<8x4xf32>
    %123 = vector.extract_strided_slice %5 {offsets = [0, 1], sizes = [8, 1], strides = [1, 1]} : vector<8x4xf32> to vector<8x1xf32>
    %124 = vector.broadcast %123 : vector<8x1xf32> to vector<8x4xf32>
    %125 = arith.mulf %122, %124 : vector<8x4xf32>
    %126 = arith.addf %116, %125 : vector<8x4xf32>
    %127 = vector.extract_strided_slice %82 {offsets = [0, 8], sizes = [8, 4], strides = [1, 1]} : vector<8x16xf32> to vector<8x4xf32>
    %128 = vector.extract_strided_slice %3 {offsets = [0, 2], sizes = [8, 1], strides = [1, 1]} : vector<8x4xf32> to vector<8x1xf32>
    %129 = vector.broadcast %128 : vector<8x1xf32> to vector<8x4xf32>
    %130 = arith.mulf %127, %129 : vector<8x4xf32>
    %131 = arith.addf %121, %130 : vector<8x4xf32>
    %132 = vector.extract_strided_slice %82 {offsets = [0, 8], sizes = [8, 4], strides = [1, 1]} : vector<8x16xf32> to vector<8x4xf32>
    %133 = vector.extract_strided_slice %5 {offsets = [0, 2], sizes = [8, 1], strides = [1, 1]} : vector<8x4xf32> to vector<8x1xf32>
    %134 = vector.broadcast %133 : vector<8x1xf32> to vector<8x4xf32>
    %135 = arith.mulf %132, %134 : vector<8x4xf32>
    %136 = arith.addf %126, %135 : vector<8x4xf32>
    %137 = vector.extract_strided_slice %82 {offsets = [0, 12], sizes = [8, 4], strides = [1, 1]} : vector<8x16xf32> to vector<8x4xf32>
    %138 = vector.extract_strided_slice %3 {offsets = [0, 3], sizes = [8, 1], strides = [1, 1]} : vector<8x4xf32> to vector<8x1xf32>
    %139 = vector.broadcast %138 : vector<8x1xf32> to vector<8x4xf32>
    %140 = arith.mulf %137, %139 : vector<8x4xf32>
    %141 = arith.addf %131, %140 : vector<8x4xf32>
    %142 = vector.extract_strided_slice %82 {offsets = [0, 12], sizes = [8, 4], strides = [1, 1]} : vector<8x16xf32> to vector<8x4xf32>
    %143 = vector.extract_strided_slice %5 {offsets = [0, 3], sizes = [8, 1], strides = [1, 1]} : vector<8x4xf32> to vector<8x1xf32>
    %144 = vector.broadcast %143 : vector<8x1xf32> to vector<8x4xf32>
    %145 = arith.mulf %142, %144 : vector<8x4xf32>
    %146 = arith.addf %136, %145 : vector<8x4xf32>
    %147 = tpu.iota {dimensions = array<i32: 0>} : vector<4x4xi32>
    %148 = tpu.iota {dimensions = array<i32: 1>} : vector<4x4xi32>
    %149 = arith.cmpi eq, %147, %148 : vector<4x4xi32>
    %150 = arith.extui %149 : vector<4x4xi1> to vector<4x4xi32>
    %151 = arith.sitofp %150 : vector<4x4xi32> to vector<4x4xf32>
    %cst_22 = arith.constant 0.000000e+00 : f32
    %152 = vector.broadcast %cst_22 : f32 to vector<8x4xf32>
    %cst_23 = arith.constant 0.000000e+00 : f32
    %153 = vector.broadcast %cst_23 : f32 to vector<8x4xf32>
    %cst_24 = arith.constant 0.000000e+00 : f32
    %154 = vector.broadcast %cst_24 : f32 to vector<8x16xf32>
    %cst_25 = arith.constant 0.000000e+00 : f32
    %155 = vector.broadcast %cst_25 : f32 to vector<8x4xf32>
    %156 = vector.extract_strided_slice %85 {offsets = [0, 0], sizes = [8, 16], strides = [1, 1]} : vector<32x16xf32> to vector<8x16xf32>
    %157 = vector.extract_strided_slice %86 {offsets = [0, 0], sizes = [8, 16], strides = [1, 1]} : vector<32x16xf32> to vector<8x16xf32>
    %158 = vector.extract_strided_slice %84 {offsets = [0, 0], sizes = [8, 4], strides = [1, 1]} : vector<32x4xf32> to vector<8x4xf32>
    %159 = arith.mulf %104, %158 : vector<8x4xf32>
    %160 = arith.mulf %159, %3 : vector<8x4xf32>
    %161 = vector.extract_strided_slice %156 {offsets = [0, 0], sizes = [8, 4], strides = [1, 1]} : vector<8x16xf32> to vector<8x4xf32>
    %162 = vector.extract_strided_slice %3 {offsets = [0, 0], sizes = [8, 1], strides = [1, 1]} : vector<8x4xf32> to vector<8x1xf32>
    %163 = vector.broadcast %162 : vector<8x1xf32> to vector<8x4xf32>
    %164 = arith.mulf %161, %163 : vector<8x4xf32>
    %165 = arith.addf %160, %164 : vector<8x4xf32>
    %166 = vector.extract_strided_slice %156 {offsets = [0, 4], sizes = [8, 4], strides = [1, 1]} : vector<8x16xf32> to vector<8x4xf32>
    %167 = vector.extract_strided_slice %3 {offsets = [0, 1], sizes = [8, 1], strides = [1, 1]} : vector<8x4xf32> to vector<8x1xf32>
    %168 = vector.broadcast %167 : vector<8x1xf32> to vector<8x4xf32>
    %169 = arith.mulf %166, %168 : vector<8x4xf32>
    %170 = arith.addf %165, %169 : vector<8x4xf32>
    %171 = vector.extract_strided_slice %156 {offsets = [0, 8], sizes = [8, 4], strides = [1, 1]} : vector<8x16xf32> to vector<8x4xf32>
    %172 = vector.extract_strided_slice %3 {offsets = [0, 2], sizes = [8, 1], strides = [1, 1]} : vector<8x4xf32> to vector<8x1xf32>
    %173 = vector.broadcast %172 : vector<8x1xf32> to vector<8x4xf32>
    %174 = arith.mulf %171, %173 : vector<8x4xf32>
    %175 = arith.addf %170, %174 : vector<8x4xf32>
    %176 = vector.extract_strided_slice %156 {offsets = [0, 12], sizes = [8, 4], strides = [1, 1]} : vector<8x16xf32> to vector<8x4xf32>
    %177 = vector.extract_strided_slice %3 {offsets = [0, 3], sizes = [8, 1], strides = [1, 1]} : vector<8x4xf32> to vector<8x1xf32>
    %178 = vector.broadcast %177 : vector<8x1xf32> to vector<8x4xf32>
    %179 = arith.mulf %176, %178 : vector<8x4xf32>
    %180 = arith.addf %175, %179 : vector<8x4xf32>
    %181 = vector.extract_strided_slice %3 {offsets = [0, 0], sizes = [8, 1], strides = [1, 1]} : vector<8x4xf32> to vector<8x1xf32>
    %182 = vector.broadcast %181 : vector<8x1xf32> to vector<8x4xf32>
    %183 = arith.mulf %182, %180 : vector<8x4xf32>
    %184 = arith.addf %152, %183 : vector<8x4xf32>
    %185 = vector.broadcast %181 : vector<8x1xf32> to vector<8x4xf32>
    %186 = arith.mulf %185, %159 : vector<8x4xf32>
    %187 = arith.addf %153, %186 : vector<8x4xf32>
    %188 = vector.broadcast %181 : vector<8x1xf32> to vector<8x16xf32>
    %189 = arith.mulf %188, %157 : vector<8x16xf32>
    %190 = arith.addf %154, %189 : vector<8x16xf32>
    %191 = arith.mulf %141, %180 : vector<8x4xf32>
    %cst_26 = arith.constant dense<0.000000e+00> : vector<8xf32>
    %192 = vector.multi_reduction <add>, %191, %cst_26 [1] : vector<8x4xf32> to vector<8xf32>
    %193 = vector.shape_cast %192 : vector<8xf32> to vector<8x1xf32>
    %194 = vector.extract_strided_slice %151 {offsets = [0, 0], sizes = [1, 4], strides = [1, 1]} : vector<4x4xf32> to vector<1x4xf32>
    %195 = vector.broadcast %193 : vector<8x1xf32> to vector<8x4xf32>
    %196 = vector.broadcast %194 : vector<1x4xf32> to vector<8x4xf32>
    %197 = arith.mulf %195, %196 : vector<8x4xf32>
    %198 = arith.addf %155, %197 : vector<8x4xf32>
    %199 = vector.extract_strided_slice %85 {offsets = [8, 0], sizes = [8, 16], strides = [1, 1]} : vector<32x16xf32> to vector<8x16xf32>
    %200 = vector.extract_strided_slice %86 {offsets = [8, 0], sizes = [8, 16], strides = [1, 1]} : vector<32x16xf32> to vector<8x16xf32>
    %201 = vector.extract_strided_slice %84 {offsets = [8, 0], sizes = [8, 4], strides = [1, 1]} : vector<32x4xf32> to vector<8x4xf32>
    %202 = arith.mulf %104, %201 : vector<8x4xf32>
    %203 = arith.mulf %202, %3 : vector<8x4xf32>
    %204 = vector.extract_strided_slice %199 {offsets = [0, 0], sizes = [8, 4], strides = [1, 1]} : vector<8x16xf32> to vector<8x4xf32>
    %205 = vector.extract_strided_slice %3 {offsets = [0, 0], sizes = [8, 1], strides = [1, 1]} : vector<8x4xf32> to vector<8x1xf32>
    %206 = vector.broadcast %205 : vector<8x1xf32> to vector<8x4xf32>
    %207 = arith.mulf %204, %206 : vector<8x4xf32>
    %208 = arith.addf %203, %207 : vector<8x4xf32>
    %209 = vector.extract_strided_slice %199 {offsets = [0, 4], sizes = [8, 4], strides = [1, 1]} : vector<8x16xf32> to vector<8x4xf32>
    %210 = vector.extract_strided_slice %3 {offsets = [0, 1], sizes = [8, 1], strides = [1, 1]} : vector<8x4xf32> to vector<8x1xf32>
    %211 = vector.broadcast %210 : vector<8x1xf32> to vector<8x4xf32>
    %212 = arith.mulf %209, %211 : vector<8x4xf32>
    %213 = arith.addf %208, %212 : vector<8x4xf32>
    %214 = vector.extract_strided_slice %199 {offsets = [0, 8], sizes = [8, 4], strides = [1, 1]} : vector<8x16xf32> to vector<8x4xf32>
    %215 = vector.extract_strided_slice %3 {offsets = [0, 2], sizes = [8, 1], strides = [1, 1]} : vector<8x4xf32> to vector<8x1xf32>
    %216 = vector.broadcast %215 : vector<8x1xf32> to vector<8x4xf32>
    %217 = arith.mulf %214, %216 : vector<8x4xf32>
    %218 = arith.addf %213, %217 : vector<8x4xf32>
    %219 = vector.extract_strided_slice %199 {offsets = [0, 12], sizes = [8, 4], strides = [1, 1]} : vector<8x16xf32> to vector<8x4xf32>
    %220 = vector.extract_strided_slice %3 {offsets = [0, 3], sizes = [8, 1], strides = [1, 1]} : vector<8x4xf32> to vector<8x1xf32>
    %221 = vector.broadcast %220 : vector<8x1xf32> to vector<8x4xf32>
    %222 = arith.mulf %219, %221 : vector<8x4xf32>
    %223 = arith.addf %218, %222 : vector<8x4xf32>
    %224 = vector.extract_strided_slice %3 {offsets = [0, 1], sizes = [8, 1], strides = [1, 1]} : vector<8x4xf32> to vector<8x1xf32>
    %225 = vector.broadcast %224 : vector<8x1xf32> to vector<8x4xf32>
    %226 = arith.mulf %225, %223 : vector<8x4xf32>
    %227 = arith.addf %184, %226 : vector<8x4xf32>
    %228 = vector.broadcast %224 : vector<8x1xf32> to vector<8x4xf32>
    %229 = arith.mulf %228, %202 : vector<8x4xf32>
    %230 = arith.addf %187, %229 : vector<8x4xf32>
    %231 = vector.broadcast %224 : vector<8x1xf32> to vector<8x16xf32>
    %232 = arith.mulf %231, %200 : vector<8x16xf32>
    %233 = arith.addf %190, %232 : vector<8x16xf32>
    %234 = arith.mulf %141, %223 : vector<8x4xf32>
    %cst_27 = arith.constant dense<0.000000e+00> : vector<8xf32>
    %235 = vector.multi_reduction <add>, %234, %cst_27 [1] : vector<8x4xf32> to vector<8xf32>
    %236 = vector.shape_cast %235 : vector<8xf32> to vector<8x1xf32>
    %237 = vector.extract_strided_slice %151 {offsets = [1, 0], sizes = [1, 4], strides = [1, 1]} : vector<4x4xf32> to vector<1x4xf32>
    %238 = vector.broadcast %236 : vector<8x1xf32> to vector<8x4xf32>
    %239 = vector.broadcast %237 : vector<1x4xf32> to vector<8x4xf32>
    %240 = arith.mulf %238, %239 : vector<8x4xf32>
    %241 = arith.addf %198, %240 : vector<8x4xf32>
    %242 = vector.extract_strided_slice %85 {offsets = [16, 0], sizes = [8, 16], strides = [1, 1]} : vector<32x16xf32> to vector<8x16xf32>
    %243 = vector.extract_strided_slice %86 {offsets = [16, 0], sizes = [8, 16], strides = [1, 1]} : vector<32x16xf32> to vector<8x16xf32>
    %244 = vector.extract_strided_slice %84 {offsets = [16, 0], sizes = [8, 4], strides = [1, 1]} : vector<32x4xf32> to vector<8x4xf32>
    %245 = arith.mulf %104, %244 : vector<8x4xf32>
    %246 = arith.mulf %245, %3 : vector<8x4xf32>
    %247 = vector.extract_strided_slice %242 {offsets = [0, 0], sizes = [8, 4], strides = [1, 1]} : vector<8x16xf32> to vector<8x4xf32>
    %248 = vector.extract_strided_slice %3 {offsets = [0, 0], sizes = [8, 1], strides = [1, 1]} : vector<8x4xf32> to vector<8x1xf32>
    %249 = vector.broadcast %248 : vector<8x1xf32> to vector<8x4xf32>
    %250 = arith.mulf %247, %249 : vector<8x4xf32>
    %251 = arith.addf %246, %250 : vector<8x4xf32>
    %252 = vector.extract_strided_slice %242 {offsets = [0, 4], sizes = [8, 4], strides = [1, 1]} : vector<8x16xf32> to vector<8x4xf32>
    %253 = vector.extract_strided_slice %3 {offsets = [0, 1], sizes = [8, 1], strides = [1, 1]} : vector<8x4xf32> to vector<8x1xf32>
    %254 = vector.broadcast %253 : vector<8x1xf32> to vector<8x4xf32>
    %255 = arith.mulf %252, %254 : vector<8x4xf32>
    %256 = arith.addf %251, %255 : vector<8x4xf32>
    %257 = vector.extract_strided_slice %242 {offsets = [0, 8], sizes = [8, 4], strides = [1, 1]} : vector<8x16xf32> to vector<8x4xf32>
    %258 = vector.extract_strided_slice %3 {offsets = [0, 2], sizes = [8, 1], strides = [1, 1]} : vector<8x4xf32> to vector<8x1xf32>
    %259 = vector.broadcast %258 : vector<8x1xf32> to vector<8x4xf32>
    %260 = arith.mulf %257, %259 : vector<8x4xf32>
    %261 = arith.addf %256, %260 : vector<8x4xf32>
    %262 = vector.extract_strided_slice %242 {offsets = [0, 12], sizes = [8, 4], strides = [1, 1]} : vector<8x16xf32> to vector<8x4xf32>
    %263 = vector.extract_strided_slice %3 {offsets = [0, 3], sizes = [8, 1], strides = [1, 1]} : vector<8x4xf32> to vector<8x1xf32>
    %264 = vector.broadcast %263 : vector<8x1xf32> to vector<8x4xf32>
    %265 = arith.mulf %262, %264 : vector<8x4xf32>
    %266 = arith.addf %261, %265 : vector<8x4xf32>
    %267 = vector.extract_strided_slice %3 {offsets = [0, 2], sizes = [8, 1], strides = [1, 1]} : vector<8x4xf32> to vector<8x1xf32>
    %268 = vector.broadcast %267 : vector<8x1xf32> to vector<8x4xf32>
    %269 = arith.mulf %268, %266 : vector<8x4xf32>
    %270 = arith.addf %227, %269 : vector<8x4xf32>
    %271 = vector.broadcast %267 : vector<8x1xf32> to vector<8x4xf32>
    %272 = arith.mulf %271, %245 : vector<8x4xf32>
    %273 = arith.addf %230, %272 : vector<8x4xf32>
    %274 = vector.broadcast %267 : vector<8x1xf32> to vector<8x16xf32>
    %275 = arith.mulf %274, %243 : vector<8x16xf32>
    %276 = arith.addf %233, %275 : vector<8x16xf32>
    %277 = arith.mulf %141, %266 : vector<8x4xf32>
    %cst_28 = arith.constant dense<0.000000e+00> : vector<8xf32>
    %278 = vector.multi_reduction <add>, %277, %cst_28 [1] : vector<8x4xf32> to vector<8xf32>
    %279 = vector.shape_cast %278 : vector<8xf32> to vector<8x1xf32>
    %280 = vector.extract_strided_slice %151 {offsets = [2, 0], sizes = [1, 4], strides = [1, 1]} : vector<4x4xf32> to vector<1x4xf32>
    %281 = vector.broadcast %279 : vector<8x1xf32> to vector<8x4xf32>
    %282 = vector.broadcast %280 : vector<1x4xf32> to vector<8x4xf32>
    %283 = arith.mulf %281, %282 : vector<8x4xf32>
    %284 = arith.addf %241, %283 : vector<8x4xf32>
    %285 = vector.extract_strided_slice %85 {offsets = [24, 0], sizes = [8, 16], strides = [1, 1]} : vector<32x16xf32> to vector<8x16xf32>
    %286 = vector.extract_strided_slice %86 {offsets = [24, 0], sizes = [8, 16], strides = [1, 1]} : vector<32x16xf32> to vector<8x16xf32>
    %287 = vector.extract_strided_slice %84 {offsets = [24, 0], sizes = [8, 4], strides = [1, 1]} : vector<32x4xf32> to vector<8x4xf32>
    %288 = arith.mulf %104, %287 : vector<8x4xf32>
    %289 = arith.mulf %288, %3 : vector<8x4xf32>
    %290 = vector.extract_strided_slice %285 {offsets = [0, 0], sizes = [8, 4], strides = [1, 1]} : vector<8x16xf32> to vector<8x4xf32>
    %291 = vector.extract_strided_slice %3 {offsets = [0, 0], sizes = [8, 1], strides = [1, 1]} : vector<8x4xf32> to vector<8x1xf32>
    %292 = vector.broadcast %291 : vector<8x1xf32> to vector<8x4xf32>
    %293 = arith.mulf %290, %292 : vector<8x4xf32>
    %294 = arith.addf %289, %293 : vector<8x4xf32>
    %295 = vector.extract_strided_slice %285 {offsets = [0, 4], sizes = [8, 4], strides = [1, 1]} : vector<8x16xf32> to vector<8x4xf32>
    %296 = vector.extract_strided_slice %3 {offsets = [0, 1], sizes = [8, 1], strides = [1, 1]} : vector<8x4xf32> to vector<8x1xf32>
    %297 = vector.broadcast %296 : vector<8x1xf32> to vector<8x4xf32>
    %298 = arith.mulf %295, %297 : vector<8x4xf32>
    %299 = arith.addf %294, %298 : vector<8x4xf32>
    %300 = vector.extract_strided_slice %285 {offsets = [0, 8], sizes = [8, 4], strides = [1, 1]} : vector<8x16xf32> to vector<8x4xf32>
    %301 = vector.extract_strided_slice %3 {offsets = [0, 2], sizes = [8, 1], strides = [1, 1]} : vector<8x4xf32> to vector<8x1xf32>
    %302 = vector.broadcast %301 : vector<8x1xf32> to vector<8x4xf32>
    %303 = arith.mulf %300, %302 : vector<8x4xf32>
    %304 = arith.addf %299, %303 : vector<8x4xf32>
    %305 = vector.extract_strided_slice %285 {offsets = [0, 12], sizes = [8, 4], strides = [1, 1]} : vector<8x16xf32> to vector<8x4xf32>
    %306 = vector.extract_strided_slice %3 {offsets = [0, 3], sizes = [8, 1], strides = [1, 1]} : vector<8x4xf32> to vector<8x1xf32>
    %307 = vector.broadcast %306 : vector<8x1xf32> to vector<8x4xf32>
    %308 = arith.mulf %305, %307 : vector<8x4xf32>
    %309 = arith.addf %304, %308 : vector<8x4xf32>
    %310 = vector.extract_strided_slice %3 {offsets = [0, 3], sizes = [8, 1], strides = [1, 1]} : vector<8x4xf32> to vector<8x1xf32>
    %311 = vector.broadcast %310 : vector<8x1xf32> to vector<8x4xf32>
    %312 = arith.mulf %311, %309 : vector<8x4xf32>
    %313 = arith.addf %270, %312 : vector<8x4xf32>
    %314 = vector.broadcast %310 : vector<8x1xf32> to vector<8x4xf32>
    %315 = arith.mulf %314, %288 : vector<8x4xf32>
    %316 = arith.addf %273, %315 : vector<8x4xf32>
    %317 = vector.broadcast %310 : vector<8x1xf32> to vector<8x16xf32>
    %318 = arith.mulf %317, %286 : vector<8x16xf32>
    %319 = arith.addf %276, %318 : vector<8x16xf32>
    %320 = arith.mulf %141, %309 : vector<8x4xf32>
    %cst_29 = arith.constant dense<0.000000e+00> : vector<8xf32>
    %321 = vector.multi_reduction <add>, %320, %cst_29 [1] : vector<8x4xf32> to vector<8xf32>
    %322 = vector.shape_cast %321 : vector<8xf32> to vector<8x1xf32>
    %323 = vector.extract_strided_slice %151 {offsets = [3, 0], sizes = [1, 4], strides = [1, 1]} : vector<4x4xf32> to vector<1x4xf32>
    %324 = vector.broadcast %322 : vector<8x1xf32> to vector<8x4xf32>
    %325 = vector.broadcast %323 : vector<1x4xf32> to vector<8x4xf32>
    %326 = arith.mulf %324, %325 : vector<8x4xf32>
    %327 = arith.addf %284, %326 : vector<8x4xf32>
    %328 = arith.mulf %316, %141 : vector<8x4xf32>
    %329 = arith.mulf %100, %313 : vector<8x4xf32>
    %330 = arith.addf %328, %329 : vector<8x4xf32>
    %331 = arith.mulf %100, %146 : vector<8x4xf32>
    %332 = vector.extract_strided_slice %319 {offsets = [0, 0], sizes = [8, 4], strides = [1, 1]} : vector<8x16xf32> to vector<8x4xf32>
    %333 = vector.extract_strided_slice %141 {offsets = [0, 0], sizes = [8, 1], strides = [1, 1]} : vector<8x4xf32> to vector<8x1xf32>
    %334 = vector.broadcast %333 : vector<8x1xf32> to vector<8x4xf32>
    %335 = arith.mulf %332, %334 : vector<8x4xf32>
    %336 = arith.addf %330, %335 : vector<8x4xf32>
    %337 = vector.extract_strided_slice %83 {offsets = [0, 0], sizes = [8, 4], strides = [1, 1]} : vector<8x16xf32> to vector<8x4xf32>
    %338 = vector.extract_strided_slice %313 {offsets = [0, 0], sizes = [8, 1], strides = [1, 1]} : vector<8x4xf32> to vector<8x1xf32>
    %339 = vector.broadcast %338 : vector<8x1xf32> to vector<8x4xf32>
    %340 = arith.mulf %337, %339 : vector<8x4xf32>
    %341 = arith.addf %336, %340 : vector<8x4xf32>
    %342 = vector.extract_strided_slice %83 {offsets = [0, 0], sizes = [8, 4], strides = [1, 1]} : vector<8x16xf32> to vector<8x4xf32>
    %343 = vector.extract_strided_slice %146 {offsets = [0, 0], sizes = [8, 1], strides = [1, 1]} : vector<8x4xf32> to vector<8x1xf32>
    %344 = vector.broadcast %343 : vector<8x1xf32> to vector<8x4xf32>
    %345 = arith.mulf %342, %344 : vector<8x4xf32>
    %346 = arith.addf %331, %345 : vector<8x4xf32>
    %347 = vector.extract_strided_slice %319 {offsets = [0, 4], sizes = [8, 4], strides = [1, 1]} : vector<8x16xf32> to vector<8x4xf32>
    %348 = vector.extract_strided_slice %141 {offsets = [0, 1], sizes = [8, 1], strides = [1, 1]} : vector<8x4xf32> to vector<8x1xf32>
    %349 = vector.broadcast %348 : vector<8x1xf32> to vector<8x4xf32>
    %350 = arith.mulf %347, %349 : vector<8x4xf32>
    %351 = arith.addf %341, %350 : vector<8x4xf32>
    %352 = vector.extract_strided_slice %83 {offsets = [0, 4], sizes = [8, 4], strides = [1, 1]} : vector<8x16xf32> to vector<8x4xf32>
    %353 = vector.extract_strided_slice %313 {offsets = [0, 1], sizes = [8, 1], strides = [1, 1]} : vector<8x4xf32> to vector<8x1xf32>
    %354 = vector.broadcast %353 : vector<8x1xf32> to vector<8x4xf32>
    %355 = arith.mulf %352, %354 : vector<8x4xf32>
    %356 = arith.addf %351, %355 : vector<8x4xf32>
    %357 = vector.extract_strided_slice %83 {offsets = [0, 4], sizes = [8, 4], strides = [1, 1]} : vector<8x16xf32> to vector<8x4xf32>
    %358 = vector.extract_strided_slice %146 {offsets = [0, 1], sizes = [8, 1], strides = [1, 1]} : vector<8x4xf32> to vector<8x1xf32>
    %359 = vector.broadcast %358 : vector<8x1xf32> to vector<8x4xf32>
    %360 = arith.mulf %357, %359 : vector<8x4xf32>
    %361 = arith.addf %346, %360 : vector<8x4xf32>
    %362 = vector.extract_strided_slice %319 {offsets = [0, 8], sizes = [8, 4], strides = [1, 1]} : vector<8x16xf32> to vector<8x4xf32>
    %363 = vector.extract_strided_slice %141 {offsets = [0, 2], sizes = [8, 1], strides = [1, 1]} : vector<8x4xf32> to vector<8x1xf32>
    %364 = vector.broadcast %363 : vector<8x1xf32> to vector<8x4xf32>
    %365 = arith.mulf %362, %364 : vector<8x4xf32>
    %366 = arith.addf %356, %365 : vector<8x4xf32>
    %367 = vector.extract_strided_slice %83 {offsets = [0, 8], sizes = [8, 4], strides = [1, 1]} : vector<8x16xf32> to vector<8x4xf32>
    %368 = vector.extract_strided_slice %313 {offsets = [0, 2], sizes = [8, 1], strides = [1, 1]} : vector<8x4xf32> to vector<8x1xf32>
    %369 = vector.broadcast %368 : vector<8x1xf32> to vector<8x4xf32>
    %370 = arith.mulf %367, %369 : vector<8x4xf32>
    %371 = arith.addf %366, %370 : vector<8x4xf32>
    %372 = vector.extract_strided_slice %83 {offsets = [0, 8], sizes = [8, 4], strides = [1, 1]} : vector<8x16xf32> to vector<8x4xf32>
    %373 = vector.extract_strided_slice %146 {offsets = [0, 2], sizes = [8, 1], strides = [1, 1]} : vector<8x4xf32> to vector<8x1xf32>
    %374 = vector.broadcast %373 : vector<8x1xf32> to vector<8x4xf32>
    %375 = arith.mulf %372, %374 : vector<8x4xf32>
    %376 = arith.addf %361, %375 : vector<8x4xf32>
    %377 = vector.extract_strided_slice %319 {offsets = [0, 12], sizes = [8, 4], strides = [1, 1]} : vector<8x16xf32> to vector<8x4xf32>
    %378 = vector.extract_strided_slice %141 {offsets = [0, 3], sizes = [8, 1], strides = [1, 1]} : vector<8x4xf32> to vector<8x1xf32>
    %379 = vector.broadcast %378 : vector<8x1xf32> to vector<8x4xf32>
    %380 = arith.mulf %377, %379 : vector<8x4xf32>
    %381 = arith.addf %371, %380 : vector<8x4xf32>
    %382 = vector.extract_strided_slice %83 {offsets = [0, 12], sizes = [8, 4], strides = [1, 1]} : vector<8x16xf32> to vector<8x4xf32>
    %383 = vector.extract_strided_slice %313 {offsets = [0, 3], sizes = [8, 1], strides = [1, 1]} : vector<8x4xf32> to vector<8x1xf32>
    %384 = vector.broadcast %383 : vector<8x1xf32> to vector<8x4xf32>
    %385 = arith.mulf %382, %384 : vector<8x4xf32>
    %386 = arith.addf %381, %385 : vector<8x4xf32>
    %387 = vector.extract_strided_slice %83 {offsets = [0, 12], sizes = [8, 4], strides = [1, 1]} : vector<8x16xf32> to vector<8x4xf32>
    %388 = vector.extract_strided_slice %146 {offsets = [0, 3], sizes = [8, 1], strides = [1, 1]} : vector<8x4xf32> to vector<8x1xf32>
    %389 = vector.broadcast %388 : vector<8x1xf32> to vector<8x4xf32>
    %390 = arith.mulf %387, %389 : vector<8x4xf32>
    %391 = arith.addf %376, %390 : vector<8x4xf32>
    %392 = arith.addf %391, %386 : vector<8x4xf32>
    %393 = arith.subf %392, %327 : vector<8x4xf32>
    %394 = arith.addf %393, %80 : vector<8x4xf32>
    %c0_30 = arith.constant 0 : index
    %c0_31 = arith.constant 0 : index
    %395 = vector.load %arg3[%c0_30, %c0_31] : memref<8x4xf32, #tpu.memory_space<vmem>>, vector<8x4xf32>
    tpu.vector_store %arg3[%c0_30, %c0_31], %394 {strides = array<i32>} : memref<8x4xf32, #tpu.memory_space<vmem>>, vector<8x4xf32>,
    return
  }
  func.func @transform_0(%arg0: i32) -> (i32, i32, i32) {
    %c0_i32 = arith.constant 0 : i32
    %c0_i32_0 = arith.constant 0 : i32
    %c0_i32_1 = arith.constant 0 : i32
    return %c0_i32, %arg0, %c0_i32_0 : i32, i32, i32
  }
  func.func @transform_1(%arg0: i32) -> (i32, i32) {
    %c0_i32 = arith.constant 0 : i32
    %c0_i32_0 = arith.constant 0 : i32
    %c0_i32_1 = arith.constant 0 : i32
    return %c0_i32, %c0_i32_0 : i32, i32
  }
  func.func @transform_2(%arg0: i32) -> (i32, i32) {
    %c0_i32 = arith.constant 0 : i32
    %c0_i32_0 = arith.constant 0 : i32
    return %arg0, %c0_i32 : i32, i32
  }
}

</mosaic_0001>

<llo_original>
// kernel: tpu_custom_call.1
$region0: #{tpu_custom_call.1}
  #allocation0 [shape = 'u32[]', space=smem, size = 0x4, offset = 0x4, fixed_abs, tag = 'smem constant byte address 0x4 - core index']
  #allocation1 [shape = 'u32[144,128]{1,0:T(1,128)}', space=vmem, size = 0x12000, scoped, tag = 'internal scratch']
  %s0 = inlined_call_operand.vmem [shape: f32[3,16,4], index: 0, kind: input, shape index: {}]
  %s1 = inlined_call_operand.vmem [shape: f32[72,40], index: 1, kind: input, shape index: {}]
  %s2 = inlined_call_operand.vmem [shape: f32[16,4], index: 2, kind: output, shape index: {}]
  %s3 = sld [smem:[#allocation0]]
  $region79: #{tpu_custom_call.1} parent=0
    _
  %s5 = ssub.s32 1, %s3
  %s6 = scalar_select 0, %s5, %s3
  $region1: #{tpu_custom_call.1} parent=0
    #allocation2 [shape = 'u8[24576]{0}', space=vmem, size = 0x6000, scoped, tag = 'input window, operand 0']
    loop: start=0, step=1, limit=4
    $region2: #{tpu_custom_call.1} parent=1 // loop_pre_header
      _
    $region3: #{tpu_custom_call.1} parent=1 // loop_header
      %s8 = sphi 0, %s12
      %p9 = scmp.ge.s32.totalorder %s8, 4
      %s18 = sphi 0, %s20
      %s21 = sphi 0, %s18
      %s22 = sphi 0, %s21
      %s38 = sphi 0, %s22
      %s42 = sphi 0, %s42
      %s44 = sphi 0, %s42
      %s45 = sphi 0, %s44
      %s59 = sphi 0, %s45
      %s65 = sphi 0, %s67
      %s68 = sphi 0, %s65
      %s69 = sphi 0, %s68
      %s85 = sphi 0, %s69
    $region4: #{tpu_custom_call.1} parent=1 // loop_header_branch
      %11 = sbr.rel (%p9) target = $region8
    $region5: #{tpu_custom_call.1} parent=1 // loop_body
      %s13 = ssub.s32 %s8, 1
      %s14 = ssub.s32 %s8, 2
      %s15 = sadd.s32 %s8, 1
      %s16 = ssub.s32 %s8, %s15
      %p17 = scmp.eq.s32.totalorder %s16, 0
      %s19 = sadd.s32 %s18, 1
      %s20 = scalar_select %p17, %s18, %s19
      %p23 = pneg %p17
      %p24 = scmp.eq.s32.totalorder %s8, 1
      %p25 = por %p23, %p24
      %p26 = scmp.ne.s32.totalorder %s18, %s21
      %p27 = scmp.eq.s32.totalorder %s8, 0
      %p28 = por %p26, %p27
      %p29 = scmp.ne.s32.totalorder %s18, %s21
      %p30 = scmp.eq.s32.totalorder %s13, 1
      %p31 = por %p29, %p30
      %p32 = scmp.ne.s32.totalorder %s21, %s22
      %p33 = scmp.eq.s32.totalorder %s13, 0
      %p34 = por %p32, %p33
      %p35 = scmp.ne.s32.totalorder %s21, %s22
      %p36 = scmp.eq.s32.totalorder %s14, 1
      %p37 = por %p35, %p36
      %p39 = scmp.ne.s32.totalorder %s22, %s38
      %p40 = scmp.eq.s32.totalorder %s14, 0
      %p41 = por %p39, %p40
      %s43 = sadd.s32 %s42, 1
      %p46 = scmp.eq.s32.totalorder %s8, 1
      %p47 = scmp.ne.s32.totalorder %s42, %s44
      %p48 = scmp.eq.s32.totalorder %s8, 0
      %p49 = por %p47, %p48
      %p50 = scmp.ne.s32.totalorder %s42, %s44
      %p51 = scmp.eq.s32.totalorder %s13, 1
      %p52 = por %p50, %p51
      %p53 = scmp.ne.s32.totalorder %s44, %s45
      %p54 = scmp.eq.s32.totalorder %s13, 0
      %p55 = por %p53, %p54
      %p56 = scmp.ne.s32.totalorder %s44, %s45
      %p57 = scmp.eq.s32.totalorder %s14, 1
      %p58 = por %p56, %p57
      %p60 = scmp.ne.s32.totalorder %s45, %s59
      %p61 = scmp.eq.s32.totalorder %s14, 0
      %p62 = por %p60, %p61
      %s63 = ssub.s32 %s8, %s15
      %p64 = scmp.eq.s32.totalorder %s63, 0
      %s66 = sadd.s32 %s65, 1
      %s67 = scalar_select %p64, %s65, %s66
      %p70 = pneg %p64
      %p71 = scmp.eq.s32.totalorder %s8, 1
      %p72 = por %p70, %p71
      %p73 = scmp.ne.s32.totalorder %s65, %s68
      %p74 = scmp.eq.s32.totalorder %s8, 0
      %p75 = por %p73, %p74
      %p76 = scmp.ne.s32.totalorder %s65, %s68
      %p77 = scmp.eq.s32.totalorder %s13, 1
      %p78 = por %p76, %p77
      %p79 = scmp.ne.s32.totalorder %s68, %s69
      %p80 = scmp.eq.s32.totalorder %s13, 0
      %p81 = por %p79, %p80
      %p82 = scmp.ne.s32.totalorder %s68, %s69
      %p83 = scmp.eq.s32.totalorder %s14, 1
      %p84 = por %p82, %p83
      %p86 = scmp.ne.s32.totalorder %s69, %s85
      %p87 = scmp.eq.s32.totalorder %s14, 0
      %p88 = por %p86, %p87
      %p89 = scmp.le.s32.totalorder 1, %s8
      %p90 = scmp.lt.s32.totalorder %s8, 3
      %p91 = pnand %p89, %p90
      %p92 = pneg %p91
      // Predicated region
      $region9: #{tpu_custom_call.1} parent=5 // pred_check
        _
      $region10: #{tpu_custom_call.1} parent=5 // pred_check_branch
        %94 = sbr.rel (%p91) target = $region12
      $region11: #{tpu_custom_call.1} parent=5 // pred_region
        %s95 = ssub.s32 %s8, 1
        // Predicated region
        $region13: #{tpu_custom_call.1} parent=11 // pred_check
          %p96 = pneg %p55
        $region14: #{tpu_custom_call.1} parent=11 // pred_check_branch
          %98 = sbr.rel (%p96) target = $region16
        $region15: #{tpu_custom_call.1} parent=11 // pred_region
          _
        $region16: #{tpu_custom_call.1} parent=11 // pred_fallthru
          _
      $region12: #{tpu_custom_call.1} parent=5 // pred_fallthru
        _
      %p99 = scmp.lt.s32.totalorder %s8, 2
      // Predicated region
      $region17: #{tpu_custom_call.1} parent=5 // pred_check
        %p100 = pneg %p99
      $region18: #{tpu_custom_call.1} parent=5 // pred_check_branch
        %102 = sbr.rel (%p100) target = $region20
      $region19: #{tpu_custom_call.1} parent=5 // pred_region
        // Predicated region
        $region21: #{tpu_custom_call.1} parent=19 // pred_check
          %p103 = pneg %p28
        $region22: #{tpu_custom_call.1} parent=19 // pred_check_branch
          %105 = sbr.rel (%p103) target = $region24
        $region23: #{tpu_custom_call.1} parent=19 // pred_region
          %s106 = sand.u32 %s18, 1
          %s107 = sand.u32 %s18, 1
          %s108 = smul.addr %s107, 24
          %s109 = scalar_lea.vmem [#allocation2], %s108
          %s110 = smul.addr %s8, 8
          %s111 = scalar_lea.vmem %s0, %s110
          // Predicated region
          $region25: #{tpu_custom_call.1} parent=23 // pred_check
            _
          $region26: #{tpu_custom_call.1} parent=23 // pred_check_branch
            %113 = sbr.rel (0) target = $region28
          $region27: #{tpu_custom_call.1} parent=23 // pred_region
            // Predicated region
            $region29: #{tpu_custom_call.1} parent=27 // pred_check
              _
            $region30: #{tpu_custom_call.1} parent=27 // pred_check_branch
              %115 = sbr.rel (0) target = $region32
            $region31: #{tpu_custom_call.1} parent=27 // pred_region
              // Predicated region
              $region44: #{tpu_custom_call.1} parent=31 // pred_check
                _
              $region45: #{tpu_custom_call.1} parent=31 // pred_check_branch
                %134 = sbr.rel (0) target = $region47
              $region46: #{tpu_custom_call.1} parent=31 // pred_region
                loop: start=0, step=1, limit=1
                $region48: #{tpu_custom_call.1} parent=46 // loop_pre_header
                  _
                $region49: #{tpu_custom_call.1} parent=46 // loop_header
                  %s136 = sphi 0, %s140
                  %p137 = scmp.ge.s32.totalorder %s136, 1
                  %s141 = sphi %s111, %s111
                  %s142 = sphi %s109, %s109
                $region50: #{tpu_custom_call.1} parent=46 // loop_header_branch
                  %139 = sbr.rel (%p137) target = $region54
                $region51: #{tpu_custom_call.1} parent=46 // loop_body
                  %v143 = vld [vmem:[%s141] sm:$0xff]
                  %144 = vst [vmem:[%s142] sm:$0xff] %v143
                  %v145 = vld [vmem:[%s141 + $0x10] sm:$0xff]
                  %146 = vst [vmem:[%s142 + $0x8] sm:$0xff] %v145
                  %v147 = vld [vmem:[%s141 + $0x20] sm:$0xff]
                  %148 = vst [vmem:[%s142 + $0x10] sm:$0xff] %v147
                $region52: #{tpu_custom_call.1} parent=46 // loop_footer
                  %s140 = sadd.s32 1, %s136
                $region53: #{tpu_custom_call.1} parent=46 // loop_footer_branch
                  %135 = sbr.rel target = $region49
                $region54: #{tpu_custom_call.1} parent=46 // loop_exit
                  _
              $region47: #{tpu_custom_call.1} parent=31 // pred_fallthru
                _
              // Predicated region
              $region55: #{tpu_custom_call.1} parent=31 // pred_check
                _
              $region56: #{tpu_custom_call.1} parent=31 // pred_check_branch
                %150 = sbr.rel target = $region58
              $region57: #{tpu_custom_call.1} parent=31 // pred_region
                _
              $region58: #{tpu_custom_call.1} parent=31 // pred_fallthru
                _
            $region32: #{tpu_custom_call.1} parent=27 // pred_fallthru
              _
            // Predicated region
            $region33: #{tpu_custom_call.1} parent=27 // pred_check
              _
            $region34: #{tpu_custom_call.1} parent=27 // pred_check_branch
              %117 = sbr.rel target = $region36
            $region35: #{tpu_custom_call.1} parent=27 // pred_region
              loop: start=0, step=1, limit=1
              $region37: #{tpu_custom_call.1} parent=35 // loop_pre_header
                _
              $region38: #{tpu_custom_call.1} parent=35 // loop_header
                %s120 = sphi 0, %s124
                %p121 = scmp.ge.s32.totalorder %s120, 1
                %s125 = sphi %s111, %s111
                %s126 = sphi %s109, %s109
              $region39: #{tpu_custom_call.1} parent=35 // loop_header_branch
                %123 = sbr.rel (%p121) target = $region43
              $region40: #{tpu_custom_call.1} parent=35 // loop_body
                %v127 = vld [vmem:[%s125] sm:$0xff]
                %128 = vst [vmem:[%s126] sm:$0xff] %v127
                %v129 = vld [vmem:[%s125 + $0x10] sm:$0xff]
                %130 = vst [vmem:[%s126 + $0x8] sm:$0xff] %v129
                %v131 = vld [vmem:[%s125 + $0x20] sm:$0xff]
                %132 = vst [vmem:[%s126 + $0x10] sm:$0xff] %v131
              $region41: #{tpu_custom_call.1} parent=35 // loop_footer
                %s124 = sadd.s32 1, %s120
              $region42: #{tpu_custom_call.1} parent=35 // loop_footer_branch
                %119 = sbr.rel target = $region38
              $region43: #{tpu_custom_call.1} parent=35 // loop_exit
                _
            $region36: #{tpu_custom_call.1} parent=27 // pred_fallthru
              _
          $region28: #{tpu_custom_call.1} parent=23 // pred_fallthru
            _
          %151 = vnop
        $region24: #{tpu_custom_call.1} parent=19 // pred_fallthru
          _
      $region20: #{tpu_custom_call.1} parent=5 // pred_fallthru
        _
      %p152 = scmp.le.s32.totalorder 1, %s8
      %p153 = scmp.lt.s32.totalorder %s8, 3
      %p154 = pnand %p152, %p153
      %p155 = pneg %p154
      // Predicated region
      $region59: #{tpu_custom_call.1} parent=5 // pred_check
        _
      $region60: #{tpu_custom_call.1} parent=5 // pred_check_branch
        %157 = sbr.rel (%p154) target = $region62
      $region61: #{tpu_custom_call.1} parent=5 // pred_region
        %s158 = ssub.s32 %s8, 1
        %s159 = sand.u32 %s21, 1
        %s160 = sand.u32 %s21, 1
        %s161 = smul.addr %s160, 24
        %s162 = scalar_lea.vmem [#allocation2], %s161
        // Predicated region
        $region63: #{tpu_custom_call.1} parent=61 // pred_check
          %p163 = pneg %p34
        $region64: #{tpu_custom_call.1} parent=61 // pred_check_branch
          %165 = sbr.rel (%p163) target = $region66
        $region65: #{tpu_custom_call.1} parent=61 // pred_region
          _
        $region66: #{tpu_custom_call.1} parent=61 // pred_fallthru
          _
        %s166 = sand.u32 %s21, 1
        %s167 = sand.u32 %s21, 1
        %s168 = smul.addr %s167, 24
        %s169 = scalar_lea.vmem [#allocation2], %s168
        %p170 = pneg %p34
        %p171 = pneg %p31
        %p172 = pneg %p55
        %p173 = pneg %p52
        %p174 = pneg %p81
        %p175 = pneg %p78
        %p176 = scmp.lt.s32.totalorder %s13, 1
        %s177 = scalar_select %p176, %s13, 1
        %s178 = smul.addr %s177, 8
        %s179 = scalar_lea.vmem %s2, %s178
        %p180 = scmp.lt.s32.totalorder %s13, 1
        %s181 = scalar_select %p180, %s13, 1
        %s182 = smul.addr %s181, 8
        %s183 = scalar_lea.vmem %s2, %s182
        %v185 = vld [vmem:[%s162] sm:$0xff]
        %s186 = scalar_lea.vmem %s162, 8 [#allocation2]
        %v187 = vld [vmem:[%s186] sm:$0xff]
        %s188 = scalar_lea.vmem %s162, 16 [#allocation2]
        %v189 = vld [vmem:[%s188] sm:$0xff]
        %v190 = vld [vmem:[%s1] sm:$0xff]
        %v191 = vld [vmem:[%s1 + $0x8] sm:$0xff]
        %v192 = vld [vmem:[%s1 + $0x10] sm:$0xff]
        %v193 = vld [vmem:[%s1 + $0x18] sm:$0xff]
        %v194 = vld [vmem:[%s1 + $0x20] sm:$0xff]
        %v195 = vld [vmem:[%s1 + $0x28] sm:$0xff]
        %v196 = vld [vmem:[%s1 + $0x30] sm:$0xff]
        %v197 = vld [vmem:[%s1 + $0x38] sm:$0xff]
        %v198 = vld [vmem:[%s1 + $0x40] sm:$0xf]
        %v199 = vld [vmem:[%s1 + $0x44] sm:$0x1]
        %v200 = vld [vmem:[%s1 + $0x45] sm:$0x1]
        %v201 = vld [vmem:[%s1 + $0x46] sm:$0x1]
        %203 = vset.pattern.permute.xlu0 0
        %204 = vperm.xlu0 %203, %v185
        %v205 = vpop.permute.xlu0 %204
        %v207 = vlaneseq
        %v208 = vshrl.u32 %v207, 7
        %v209 = vsub.s32 0, %v208
        %v210 = vrot.slane %v198, %v209
        %v211 = vmul.f32 %v205, %v210
        %212 = vset.pattern.permute.xlu0 1
        %213 = vperm.xlu0 %212, %v185
        %v214 = vpop.permute.xlu0 %213
        %v216 = vlaneseq
        %v217 = vshrl.u32 %v216, 7
        %v218 = vsub.s32 1, %v217
        %v219 = vrot.slane %v198, %v218
        %v220 = vmul.f32 %v214, %v219
        %v221 = vadd.f32 %v211, %v220
        %222 = vset.pattern.permute.xlu0 2
        %223 = vperm.xlu0 %222, %v185
        %v224 = vpop.permute.xlu0 %223
        %v226 = vlaneseq
        %v227 = vshrl.u32 %v226, 7
        %v228 = vsub.s32 2, %v227
        %v229 = vrot.slane %v198, %v228
        %v230 = vmul.f32 %v224, %v229
        %v231 = vadd.f32 %v221, %v230
        %232 = vset.pattern.permute.xlu0 3
        %233 = vperm.xlu0 %232, %v185
        %v234 = vpop.permute.xlu0 %233
        %v236 = vlaneseq
        %v237 = vshrl.u32 %v236, 7
        %v238 = vsub.s32 3, %v237
        %v239 = vrot.slane %v198, %v238
        %v240 = vmul.f32 %v234, %v239
        %v241 = vadd.f32 %v231, %v240
        %v242 = vlaneseq
        %v243 = vshrl.u32 %v242, 7
        %v244 = vsub.s32 0, %v243
        %v245 = vrot.slane %v199, %v244
        %v246 = vadd.f32 %v241, %v245
        %v247 = vtanh.pop %v246
        %v248 = vmul.f32 %v247, %v247
        %v249 = vsub.f32 1.0, %v248
        %v250 = vmul.f32 %v249, %v210
        %v251 = vmul.f32 %v249, %v219
        %v252 = vmul.f32 %v249, %v229
        %v253 = vmul.f32 %v249, %v239
        %v254 = vpack.c.bf16 %v250, %v247
        %v255 = vpack.c.bf16 %v252, %v251
        %v256 = vpack.c.bf16 %v253, %v253
        %v257 = vpack.c.bf16 %v191, %v190
        %v258 = vpack.c.bf16 %v193, %v192
        %vm259 = vcmask 261120
        %v261 = vsel %vm259, %v254, 0
        %v264 = vsel %vm259, %v255, 0
        %v267 = vsel %vm259, %v256, 0
        %269 = vmatprep.subr.bf16.mxu0 0
        %270 = vmatpush1.bf16.msra.mxu0 %v257
        %271 = vmatprep.subr.bf16.mxu0 0
        %272 = vmatpush1.bf16.msra.mxu0 %v258
        %273 = vmatprep.subr.bf16.mxu0 0
        %274 = vmatpush1.bf16.msra.mxu0 0
        %275 = vmatprep.subr.bf16.mxu0 0
        %276 = vmatpush1.bf16.msra.mxu0 0
        %277 = vmatprep.subr.bf16.mxu0 0
        %278 = vmatpush1.bf16.msra.mxu0 0
        %279 = vmatprep.subr.bf16.mxu0 0
        %280 = vmatpush1.bf16.msra.mxu0 0
        %281 = vmatprep.subr.bf16.mxu0 0
        %282 = vmatpush1.bf16.msra.mxu0 0
        %283 = vmatprep.subr.bf16.mxu0 0
        %284 = vmatpush1.bf16.msra.mxu0 0
        %285 = vmatprep.subr.bf16.mxu0 0
        %286 = vmatpush1.bf16.msra.mxu0 0
        %287 = vmatprep.subr.bf16.mxu0 0
        %288 = vmatpush1.bf16.msra.mxu0 0
        %289 = vmatprep.subr.bf16.mxu0 0
        %290 = vmatpush1.bf16.msra.mxu0 0
        %291 = vmatprep.subr.bf16.mxu0 0
        %292 = vmatpush1.bf16.msra.mxu0 0
        %293 = vmatprep.subr.bf16.mxu0 0
        %294 = vmatpush1.bf16.msra.mxu0 0
        %295 = vmatprep.subr.bf16.mxu0 0
        %296 = vmatpush1.bf16.msra.mxu0 0
        %297 = vmatprep.subr.bf16.mxu0 0
        %298 = vmatpush1.bf16.msra.mxu0 0
        %299 = vmatprep.subr.bf16.mxu0 0
        %300 = vmatpush1.bf16.msra.mxu0 0
        %301 = vmatprep.mubr.bf16.mxu0 0
        %302 = vmatmul.mubr.bf16.gmra.mrb[0].mxu0 %v261
        %v303 = vpop.f32.mrb[0].mxu0
        %v304 = vadd.f32 0.0, %v303
        %v305 = vpop.f32.mrb[0].mxu0
        %v306 = vpop.f32.mrb[0].mxu0
        %v307 = vadd.f32 0.0, %v306
        %v308 = vpop.f32.mrb[0].mxu0
        %309 = vmatprep.mubr.bf16.mxu0 0
        %310 = vmatmul.mubr.bf16.gmra.mrb[0].mxu0 %v264
        %v311 = vpop.f32.mrb[0].mxu0
        %v312 = vadd.f32 0.0, %v311
        %v313 = vpop.f32.mrb[0].mxu0
        %v314 = vpop.f32.mrb[0].mxu0
        %v315 = vadd.f32 0.0, %v314
        %v316 = vpop.f32.mrb[0].mxu0
        %317 = vmatprep.mubr.bf16.mxu0 0
        %318 = vmatmul.mubr.bf16.gmra.mrb[0].mxu0 %v267
        %v319 = vpop.f32.mrb[0].mxu0
        %v320 = vadd.f32 0.0, %v319
        %v321 = vpop.f32.mrb[0].mxu0
        %v322 = vpop.f32.mrb[0].mxu0
        %v323 = vpop.f32.mrb[0].mxu0
        %324 = vdwg.mxu0
        %v325 = vlaneseq
        %v326 = vshrl.u32 %v325, 7
        %v327 = vsub.s32 0, %v326
        %v328 = vrot.slane %v200, %v327
        %v329 = vadd.f32 %v304, %v328
        %v330 = vtanh.pop %v329
        %v331 = vmul.f32 %v330, %v330
        %v332 = vsub.f32 1.0, %v331
        %v333 = vmul.f32 %v332, %v307
        %v334 = vmul.f32 %v332, %v312
        %v335 = vmul.f32 %v332, %v315
        %v336 = vmul.f32 %v332, %v320
        %v337 = vpack.c.bf16 %v333, %v330
        %v338 = vpack.c.bf16 %v335, %v334
        %v339 = vpack.c.bf16 %v336, %v336
        %v340 = vpack.c.bf16 %v195, %v194
        %v341 = vpack.c.bf16 %v197, %v196
        %v343 = vsel %vm259, %v337, 0
        %v346 = vsel %vm259, %v338, 0
        %v349 = vsel %vm259, %v339, 0
        %351 = vmatprep.subr.bf16.mxu0 0
        %352 = vmatpush1.bf16.msra.mxu0 %v340
        %353 = vmatprep.subr.bf16.mxu0 0
        %354 = vmatpush1.bf16.msra.mxu0 %v341
        %355 = vmatprep.subr.bf16.mxu0 0
        %356 = vmatpush1.bf16.msra.mxu0 0
        %357 = vmatprep.subr.bf16.mxu0 0
        %358 = vmatpush1.bf16.msra.mxu0 0
        %359 = vmatprep.subr.bf16.mxu0 0
        %360 = vmatpush1.bf16.msra.mxu0 0
        %361 = vmatprep.subr.bf16.mxu0 0
        %362 = vmatpush1.bf16.msra.mxu0 0
        %363 = vmatprep.subr.bf16.mxu0 0
        %364 = vmatpush1.bf16.msra.mxu0 0
        %365 = vmatprep.subr.bf16.mxu0 0
        %366 = vmatpush1.bf16.msra.mxu0 0
        %367 = vmatprep.subr.bf16.mxu0 0
        %368 = vmatpush1.bf16.msra.mxu0 0
        %369 = vmatprep.subr.bf16.mxu0 0
        %370 = vmatpush1.bf16.msra.mxu0 0
        %371 = vmatprep.subr.bf16.mxu0 0
        %372 = vmatpush1.bf16.msra.mxu0 0
        %373 = vmatprep.subr.bf16.mxu0 0
        %374 = vmatpush1.bf16.msra.mxu0 0
        %375 = vmatprep.subr.bf16.mxu0 0
        %376 = vmatpush1.bf16.msra.mxu0 0
        %377 = vmatprep.subr.bf16.mxu0 0
        %378 = vmatpush1.bf16.msra.mxu0 0
        %379 = vmatprep.subr.bf16.mxu0 0
        %380 = vmatpush1.bf16.msra.mxu0 0
        %381 = vmatprep.subr.bf16.mxu0 0
        %382 = vmatpush1.bf16.msra.mxu0 0
        %383 = vmatprep.mubr.bf16.mxu0 0
        %384 = vmatmul.mubr.bf16.gmra.mrb[0].mxu0 %v343
        %v385 = vpop.f32.mrb[0].mxu0
        %v386 = vadd.f32 0.0, %v385
        %v387 = vpop.f32.mrb[0].mxu0
        %v388 = vpop.f32.mrb[0].mxu0
        %v389 = vadd.f32 0.0, %v388
        %v390 = vpop.f32.mrb[0].mxu0
        %391 = vmatprep.mubr.bf16.mxu0 0
        %392 = vmatmul.mubr.bf16.gmra.mrb[0].mxu0 %v346
        %v393 = vpop.f32.mrb[0].mxu0
        %v394 = vadd.f32 0.0, %v393
        %v395 = vpop.f32.mrb[0].mxu0
        %v396 = vpop.f32.mrb[0].mxu0
        %v397 = vadd.f32 0.0, %v396
        %v398 = vpop.f32.mrb[0].mxu0
        %399 = vmatprep.mubr.bf16.mxu0 0
        %400 = vmatmul.mubr.bf16.gmra.mrb[0].mxu0 %v349
        %v401 = vpop.f32.mrb[0].mxu0
        %v402 = vadd.f32 0.0, %v401
        %v403 = vpop.f32.mrb[0].mxu0
        %v404 = vpop.f32.mrb[0].mxu0
        %v405 = vpop.f32.mrb[0].mxu0
        %406 = vdwg.mxu0
        %v407 = vlaneseq
        %v408 = vshrl.u32 %v407, 7
        %v409 = vsub.s32 0, %v408
        %v410 = vrot.slane %v201, %v409
        %v411 = vadd.f32 %v386, %v410
        %v412 = vand.u32 2147483647, %v411
        %v413 = vsub.f32 0.0, %v412
        %v414 = vmul.f32 %v413, 1.442695
        %v415 = vpow.pop %v414
        %v416 = vadd.f32 %v415, 1.0
        %v417 = vrcp.pop %v416
        %v418 = vmul.f32 1.0, %v417
        %v419 = vmax.f32 %v411, 0.0
        %v420 = vlog2.pop %v416
        %v421 = vmul.f32 %v420, 0.6931472
        %v422 = vadd.f32 %v419, %v421
        %vm423 = vcmp.ge.f32.partialorder %v411, 0.0
        %v424 = vmul.f32 %v415, %v418
        %v425 = vsel %vm423, %v418, %v424
        %427 = vrot.lane.b32.xlu0 %v187, 4
        %v428 = vpop.permute.xlu0 %427
        %v430 = vmul.f32 %v422, %v428
        %432 = vrot.lane.b32.xlu0 %v189, 4
        %v433 = vpop.permute.xlu0 %432
        %v435 = vmul.f32 %v422, %v433
        %436 = vset.pattern.permute.xlu0 0
        %437 = vperm.xlu0 %436, %v187
        %v438 = vpop.permute.xlu0 %437
        %v440 = vmul.f32 %v411, %v438
        %442 = vrot.lane.b32.xlu0 %v440, 124
        %v443 = vpop.permute.xlu0 %442
        %v445 = vadd.f32 %v430, %v443
        %446 = vset.pattern.permute.xlu0 0
        %447 = vperm.xlu0 %446, %v189
        %v448 = vpop.permute.xlu0 %447
        %v450 = vmul.f32 %v411, %v448
        %452 = vrot.lane.b32.xlu0 %v450, 124
        %v453 = vpop.permute.xlu0 %452
        %v455 = vadd.f32 %v435, %v453
        %456 = vset.pattern.permute.xlu0 1
        %457 = vperm.xlu0 %456, %v187
        %v458 = vpop.permute.xlu0 %457
        %v460 = vmul.f32 %v411, %v458
        %462 = vrot.lane.b32.xlu0 %v460, 120
        %v463 = vpop.permute.xlu0 %462
        %v465 = vadd.f32 %v445, %v463
        %466 = vset.pattern.permute.xlu0 1
        %467 = vperm.xlu0 %466, %v189
        %v468 = vpop.permute.xlu0 %467
        %v470 = vmul.f32 %v411, %v468
        %472 = vrot.lane.b32.xlu0 %v470, 120
        %v473 = vpop.permute.xlu0 %472
        %v475 = vadd.f32 %v455, %v473
        %476 = vset.pattern.permute.xlu0 2
        %477 = vperm.xlu0 %476, %v187
        %v478 = vpop.permute.xlu0 %477
        %v480 = vmul.f32 %v411, %v478
        %482 = vrot.lane.b32.xlu0 %v480, 116
        %v483 = vpop.permute.xlu0 %482
        %v485 = vadd.f32 %v465, %v483
        %486 = vset.pattern.permute.xlu0 2
        %487 = vperm.xlu0 %486, %v189
        %v488 = vpop.permute.xlu0 %487
        %v490 = vmul.f32 %v411, %v488
        %492 = vrot.lane.b32.xlu0 %v490, 116
        %v493 = vpop.permute.xlu0 %492
        %v495 = vadd.f32 %v475, %v493
        %496 = vset.pattern.permute.xlu0 3
        %497 = vperm.xlu0 %496, %v187
        %v498 = vpop.permute.xlu0 %497
        %v500 = vmul.f32 %v411, %v498
        %502 = vrot.lane.b32.xlu0 %v500, 112
        %v503 = vpop.permute.xlu0 %502
        %v505 = vadd.f32 %v485, %v503
        %506 = vset.pattern.permute.xlu0 3
        %507 = vperm.xlu0 %506, %v189
        %v508 = vpop.permute.xlu0 %507
        %v510 = vmul.f32 %v411, %v508
        %512 = vrot.lane.b32.xlu0 %v510, 112
        %v513 = vpop.permute.xlu0 %512
        %v515 = vadd.f32 %v495, %v513
        %v516 = vlaneseq
        %v517 = vshrl.u32 %v516, 7
        %v518 = vlaneseq
        %v519 = vand.u32 %v518, 127
        %vm520 = vcmp.eq.s32.totalorder %v517, %v519
        %v521 = vsel %vm520, 1, 0
        %v522 = vcvt.s32.f32 %v521
        %v523 = vmul.f32 %v425, %v389
        %v524 = vmul.f32 %v523, %v428
        %v525 = vmul.f32 %v389, %v438
        %527 = vrot.lane.b32.xlu0 %v525, 124
        %v528 = vpop.permute.xlu0 %527
        %v530 = vadd.f32 %v524, %v528
        %v531 = vmul.f32 %v389, %v458
        %533 = vrot.lane.b32.xlu0 %v531, 120
        %v534 = vpop.permute.xlu0 %533
        %v536 = vadd.f32 %v530, %v534
        %v537 = vmul.f32 %v389, %v478
        %539 = vrot.lane.b32.xlu0 %v537, 116
        %v540 = vpop.permute.xlu0 %539
        %v542 = vadd.f32 %v536, %v540
        %v543 = vmul.f32 %v389, %v498
        %545 = vrot.lane.b32.xlu0 %v543, 112
        %v546 = vpop.permute.xlu0 %545
        %v548 = vadd.f32 %v542, %v546
        %v549 = vmul.f32 %v438, %v548
        %v550 = vadd.f32 %v549, 0.0
        %v551 = vmul.f32 %v438, %v523
        %v552 = vadd.f32 %v551, 0.0
        %v553 = vadd.f32 %v525, 0.0
        %v554 = vmul.f32 %v505, %v548
        %556 = vrot.lane.b32.xlu0 %v554, 124
        %v557 = vpop.permute.xlu0 %556
        %vm559 = vcmask 31744
        %v560 = vsel %vm559, %v557, 0.0
        %561 = vadd.xlane.f32.xlu0 %v560
        %v562 = vpop.xlane.xlu0 %561
        %v563 = vlaneseq
        %v564 = vshrl.u32 %v563, 7
        %v565 = vsub.s32 0, %v564
        %v566 = vrot.slane %v522, %v565
        %v567 = vmul.f32 %v562, %v566
        %v568 = vadd.f32 %v567, 0.0
        %v569 = vmul.f32 %v425, %v394
        %v570 = vmul.f32 %v569, %v428
        %v571 = vmul.f32 %v394, %v438
        %573 = vrot.lane.b32.xlu0 %v571, 124
        %v574 = vpop.permute.xlu0 %573
        %v576 = vadd.f32 %v570, %v574
        %v577 = vmul.f32 %v394, %v458
        %579 = vrot.lane.b32.xlu0 %v577, 120
        %v580 = vpop.permute.xlu0 %579
        %v582 = vadd.f32 %v576, %v580
        %v583 = vmul.f32 %v394, %v478
        %585 = vrot.lane.b32.xlu0 %v583, 116
        %v586 = vpop.permute.xlu0 %585
        %v588 = vadd.f32 %v582, %v586
        %v589 = vmul.f32 %v394, %v498
        %591 = vrot.lane.b32.xlu0 %v589, 112
        %v592 = vpop.permute.xlu0 %591
        %v594 = vadd.f32 %v588, %v592
        %v595 = vmul.f32 %v458, %v594
        %v596 = vadd.f32 %v550, %v595
        %v597 = vmul.f32 %v458, %v569
        %v598 = vadd.f32 %v552, %v597
        %v599 = vadd.f32 %v553, %v577
        %v600 = vmul.f32 %v505, %v594
        %602 = vrot.lane.b32.xlu0 %v600, 124
        %v603 = vpop.permute.xlu0 %602
        %v605 = vsel %vm559, %v603, 0.0
        %606 = vadd.xlane.f32.xlu0 %v605
        %v607 = vpop.xlane.xlu0 %606
        %v608 = vlaneseq
        %v609 = vshrl.u32 %v608, 7
        %v610 = vsub.s32 1, %v609
        %v611 = vrot.slane %v522, %v610
        %v612 = vmul.f32 %v607, %v611
        %v613 = vadd.f32 %v568, %v612
        %v614 = vmul.f32 %v425, %v397
        %v615 = vmul.f32 %v614, %v428
        %v616 = vmul.f32 %v397, %v438
        %618 = vrot.lane.b32.xlu0 %v616, 124
        %v619 = vpop.permute.xlu0 %618
        %v621 = vadd.f32 %v615, %v619
        %v622 = vmul.f32 %v397, %v458
        %624 = vrot.lane.b32.xlu0 %v622, 120
        %v625 = vpop.permute.xlu0 %624
        %v627 = vadd.f32 %v621, %v625
        %v628 = vmul.f32 %v397, %v478
        %630 = vrot.lane.b32.xlu0 %v628, 116
        %v631 = vpop.permute.xlu0 %630
        %v633 = vadd.f32 %v627, %v631
        %v634 = vmul.f32 %v397, %v498
        %636 = vrot.lane.b32.xlu0 %v634, 112
        %v637 = vpop.permute.xlu0 %636
        %v639 = vadd.f32 %v633, %v637
        %v640 = vmul.f32 %v478, %v639
        %v641 = vadd.f32 %v596, %v640
        %v642 = vmul.f32 %v478, %v614
        %v643 = vadd.f32 %v598, %v642
        %v644 = vadd.f32 %v599, %v628
        %v645 = vmul.f32 %v505, %v639
        %647 = vrot.lane.b32.xlu0 %v645, 124
        %v648 = vpop.permute.xlu0 %647
        %v650 = vsel %vm559, %v648, 0.0
        %651 = vadd.xlane.f32.xlu0 %v650
        %v652 = vpop.xlane.xlu0 %651
        %v653 = vlaneseq
        %v654 = vshrl.u32 %v653, 7
        %v655 = vsub.s32 2, %v654
        %v656 = vrot.slane %v522, %v655
        %v657 = vmul.f32 %v652, %v656
        %v658 = vadd.f32 %v613, %v657
        %v659 = vmul.f32 %v425, %v402
        %v660 = vmul.f32 %v659, %v428
        %v661 = vmul.f32 %v402, %v438
        %663 = vrot.lane.b32.xlu0 %v661, 124
        %v664 = vpop.permute.xlu0 %663
        %v666 = vadd.f32 %v660, %v664
        %v667 = vmul.f32 %v402, %v458
        %669 = vrot.lane.b32.xlu0 %v667, 120
        %v670 = vpop.permute.xlu0 %669
        %v672 = vadd.f32 %v666, %v670
        %v673 = vmul.f32 %v402, %v478
        %675 = vrot.lane.b32.xlu0 %v673, 116
        %v676 = vpop.permute.xlu0 %675
        %v678 = vadd.f32 %v672, %v676
        %v679 = vmul.f32 %v402, %v498
        %681 = vrot.lane.b32.xlu0 %v679, 112
        %v682 = vpop.permute.xlu0 %681
        %v684 = vadd.f32 %v678, %v682
        %v685 = vmul.f32 %v498, %v684
        %v686 = vadd.f32 %v641, %v685
        %v687 = vmul.f32 %v498, %v659
        %v688 = vadd.f32 %v643, %v687
        %v689 = vadd.f32 %v644, %v679
        %v690 = vmul.f32 %v505, %v684
        %692 = vrot.lane.b32.xlu0 %v690, 124
        %v693 = vpop.permute.xlu0 %692
        %v695 = vsel %vm559, %v693, 0.0
        %696 = vadd.xlane.f32.xlu0 %v695
        %v697 = vpop.xlane.xlu0 %696
        %v698 = vlaneseq
        %v699 = vshrl.u32 %v698, 7
        %v700 = vsub.s32 3, %v699
        %v701 = vrot.slane %v522, %v700
        %v702 = vmul.f32 %v697, %v701
        %v703 = vadd.f32 %v658, %v702
        %v704 = vmul.f32 %v688, %v505
        %v705 = vmul.f32 %v422, %v686
        %v706 = vadd.f32 %v704, %v705
        %v707 = vmul.f32 %v422, %v515
        %709 = vset.pattern.permute.xlu0 4
        %710 = vperm.xlu0 %709, %v505
        %v711 = vpop.permute.xlu0 %710
        %v713 = vmul.f32 %v689, %v711
        %715 = vrot.lane.b32.xlu0 %v713, 108
        %v716 = vpop.permute.xlu0 %715
        %v718 = vadd.f32 %v706, %v716
        %720 = vset.pattern.permute.xlu0 4
        %721 = vperm.xlu0 %720, %v686
        %v722 = vpop.permute.xlu0 %721
        %v724 = vmul.f32 %v411, %v722
        %726 = vrot.lane.b32.xlu0 %v724, 108
        %v727 = vpop.permute.xlu0 %726
        %v729 = vadd.f32 %v718, %v727
        %731 = vset.pattern.permute.xlu0 4
        %732 = vperm.xlu0 %731, %v515
        %v733 = vpop.permute.xlu0 %732
        %v735 = vmul.f32 %v411, %v733
        %737 = vrot.lane.b32.xlu0 %v735, 108
        %v738 = vpop.permute.xlu0 %737
        %v740 = vadd.f32 %v707, %v738
        %741 = vset.pattern.permute.xlu0 5
        %742 = vperm.xlu0 %741, %v505
        %v743 = vpop.permute.xlu0 %742
        %v745 = vmul.f32 %v689, %v743
        %747 = vrot.lane.b32.xlu0 %v745, 104
        %v748 = vpop.permute.xlu0 %747
        %v750 = vadd.f32 %v729, %v748
        %751 = vset.pattern.permute.xlu0 5
        %752 = vperm.xlu0 %751, %v686
        %v753 = vpop.permute.xlu0 %752
        %v755 = vmul.f32 %v411, %v753
        %757 = vrot.lane.b32.xlu0 %v755, 104
        %v758 = vpop.permute.xlu0 %757
        %v760 = vadd.f32 %v750, %v758
        %761 = vset.pattern.permute.xlu0 5
        %762 = vperm.xlu0 %761, %v515
        %v763 = vpop.permute.xlu0 %762
        %v765 = vmul.f32 %v411, %v763
        %767 = vrot.lane.b32.xlu0 %v765, 104
        %v768 = vpop.permute.xlu0 %767
        %v770 = vadd.f32 %v740, %v768
        %771 = vset.pattern.permute.xlu0 6
        %772 = vperm.xlu0 %771, %v505
        %v773 = vpop.permute.xlu0 %772
        %v775 = vmul.f32 %v689, %v773
        %777 = vrot.lane.b32.xlu0 %v775, 100
        %v778 = vpop.permute.xlu0 %777
        %v780 = vadd.f32 %v760, %v778
        %781 = vset.pattern.permute.xlu0 6
        %782 = vperm.xlu0 %781, %v686
        %v783 = vpop.permute.xlu0 %782
        %v785 = vmul.f32 %v411, %v783
        %787 = vrot.lane.b32.xlu0 %v785, 100
        %v788 = vpop.permute.xlu0 %787
        %v790 = vadd.f32 %v780, %v788
        %791 = vset.pattern.permute.xlu0 6
        %792 = vperm.xlu0 %791, %v515
        %v793 = vpop.permute.xlu0 %792
        %v795 = vmul.f32 %v411, %v793
        %797 = vrot.lane.b32.xlu0 %v795, 100
        %v798 = vpop.permute.xlu0 %797
        %v800 = vadd.f32 %v770, %v798
        %801 = vset.pattern.permute.xlu0 7
        %802 = vperm.xlu0 %801, %v505
        %v803 = vpop.permute.xlu0 %802
        %v805 = vmul.f32 %v689, %v803
        %807 = vrot.lane.b32.xlu0 %v805, 96
        %v808 = vpop.permute.xlu0 %807
        %v810 = vadd.f32 %v790, %v808
        %811 = vset.pattern.permute.xlu0 7
        %812 = vperm.xlu0 %811, %v686
        %v813 = vpop.permute.xlu0 %812
        %v815 = vmul.f32 %v411, %v813
        %817 = vrot.lane.b32.xlu0 %v815, 96
        %v818 = vpop.permute.xlu0 %817
        %v820 = vadd.f32 %v810, %v818
        %821 = vset.pattern.permute.xlu0 7
        %822 = vperm.xlu0 %821, %v515
        %v823 = vpop.permute.xlu0 %822
        %v825 = vmul.f32 %v411, %v823
        %827 = vrot.lane.b32.xlu0 %v825, 96
        %v828 = vpop.permute.xlu0 %827
        %v830 = vadd.f32 %v800, %v828
        %v831 = vadd.f32 %v830, %v820
        %833 = vrot.lane.b32.xlu0 %v703, 4
        %v834 = vpop.permute.xlu0 %833
        %v836 = vsub.f32 %v831, %v834
        %838 = vrot.lane.b32.xlu0 %v411, 4
        %v839 = vpop.permute.xlu0 %838
        %v841 = vadd.f32 %v836, %v839
        %843 = vrot.lane.b32.xlu0 %v841, 124
        %v844 = vpop.permute.xlu0 %843
        %846 = vst.msk [vmem:[%s183] sm:$0xff] %vm559, %v844
        %p847 = scmp.lt.s32.totalorder %s13, 1
        %s848 = scalar_select %p847, %s13, 1
        %s849 = smul.addr %s848, 8
        %s850 = scalar_lea.vmem %s2, %s849
        // Predicated region
        $region67: #{tpu_custom_call.1} parent=61 // pred_check
          %p851 = pneg %p78
        $region68: #{tpu_custom_call.1} parent=61 // pred_check_branch
          %853 = sbr.rel (%p851) target = $region70
        $region69: #{tpu_custom_call.1} parent=61 // pred_region
          _
        $region70: #{tpu_custom_call.1} parent=61 // pred_fallthru
          _
      $region62: #{tpu_custom_call.1} parent=5 // pred_fallthru
        _
      %p854 = scmp.le.s32.totalorder 2, %s8
      // Predicated region
      $region71: #{tpu_custom_call.1} parent=5 // pred_check
        %p855 = pneg %p854
      $region72: #{tpu_custom_call.1} parent=5 // pred_check_branch
        %857 = sbr.rel (%p855) target = $region74
      $region73: #{tpu_custom_call.1} parent=5 // pred_region
        %s858 = ssub.s32 %s8, 2
        // Predicated region
        $region75: #{tpu_custom_call.1} parent=73 // pred_check
          %p859 = pneg %p84
        $region76: #{tpu_custom_call.1} parent=73 // pred_check_branch
          %861 = sbr.rel (%p859) target = $region78
        $region77: #{tpu_custom_call.1} parent=73 // pred_region
          %p862 = scmp.lt.s32.totalorder %s14, 1
          %s863 = scalar_select %p862, %s14, 1
          %s864 = smul.addr %s863, 8
          %s865 = scalar_lea.vmem %s2, %s864
        $region78: #{tpu_custom_call.1} parent=73 // pred_fallthru
          _
      $region74: #{tpu_custom_call.1} parent=5 // pred_fallthru
        _
    $region6: #{tpu_custom_call.1} parent=1 // loop_footer
      %s12 = sadd.s32 1, %s8
    $region7: #{tpu_custom_call.1} parent=1 // loop_footer_branch
      %7 = sbr.rel target = $region3
    $region8: #{tpu_custom_call.1} parent=1 // loop_exit
      _

</llo_original>
